<compile_context>
chip_gen: v6e
topology: v6e:2x2x1
jax: 0.10.0
libtpu: 0.0.40
codegen_flags: <defaults>
</compile_context>

<pallas_src>
import functools

import jax
import jax.numpy as jnp
from jax import lax
from jax.experimental import pallas as pl
from jax.experimental.pallas import tpu as pltpu

H_P = 128      # padded hidden lane width
HC_P = 128     # padded heads*hidden lane width (96 -> 128)
OUT_P = 128    # padded out_channels lane width
POOL_ROWS = 8  # pooled/fc path rows (sublane-aligned, all identical)


# ---------------------------------------------------------------------------
# Fused per-graph forward kernel (one grid step == one graph)
# ---------------------------------------------------------------------------
def _carate_kernel(x_ref, adj_ref, pool_ref,
                   c1_wrel_ref, c1_brel_ref, c1_wroot_ref,
                   g_wl_ref, g_bl_ref, g_wr_ref, g_br_ref, g_att_ref,
                   g_wres_ref, g_bias_ref,
                   c2_wrel_ref, c2_brel_ref, c2_wroot_ref,
                   fc1_w_ref, fc1_b_ref, fc2_w_ref, fc2_b_ref,
                   o_ref, *, heads, hidden, negative_slope):
    f32 = jnp.float32
    bf16 = jnp.bfloat16

    x = x_ref[0]            # [N, IN]  bf16 (real in_channels, no lane padding)
    adj = adj_ref[0]        # [N, N]   bf16, A[dst, src] = edge multiplicity
    n = adj.shape[0]

    # ---- conv1: GraphConv(aggr='add') + ReLU ------------------------------
    agg1 = jnp.dot(adj, x, preferred_element_type=f32)                   # [N, IN]
    h1 = (jnp.dot(agg1.astype(bf16), c1_wrel_ref[...], preferred_element_type=f32)
          + c1_brel_ref[...]
          + jnp.dot(x, c1_wroot_ref[...], preferred_element_type=f32))
    h1 = jnp.maximum(h1, 0.0)                                            # [N, H_P]
    h1b = h1.astype(bf16)
    # F.dropout(p=dropout_gat) is identity in eval mode.

    # ---- gat1: GATv2Conv(heads, concat=True, residual=True) + ReLU --------
    # Lane-packed head projections: a single MXU pass covers all heads.
    xl_all = jnp.dot(h1b, g_wl_ref[...], preferred_element_type=f32) + g_bl_ref[...]
    xr_all = jnp.dot(h1b, g_wr_ref[...], preferred_element_type=f32) + g_br_ref[...]
    res_all = jnp.dot(h1b, g_wres_ref[...], preferred_element_type=f32)  # [N, HC_P]

    # add_self_loops=True adjacency derived in-kernel (no extra NxN f32 input):
    # drop any existing self loop, add exactly one.
    rows = lax.broadcasted_iota(jnp.int32, (n, n), 0)
    cols = lax.broadcasted_iota(jnp.int32, (n, n), 1)
    diag = rows == cols
    adjg = jnp.where(diag, 1.0, adj.astype(f32))                         # [Nd, Ns]
    mask = adjg > 0.0

    head_aggr = []
    for h in range(heads):
        lo = h * hidden
        xl = xl_all[:, lo:lo + hidden]                                   # [Ns, hidden]
        xr = xr_all[:, lo:lo + hidden]                                   # [Nd, hidden]
        att = g_att_ref[h]                                               # [1, hidden]
        # score(i<-j) = att . leaky_relu(xr[i] + xl[j]); pairwise tensor is
        # built over the real `hidden` channels only (not 128 padded lanes).
        z = xr[:, None, :] + xl[None, :, :]                              # [Nd, Ns, hidden]
        z = jnp.where(z > 0.0, z, negative_slope * z)
        score = jnp.sum(z * att, axis=-1)                                # [Nd, Ns]
        score = jnp.where(mask, score, -1e30)
        m = jnp.max(score, axis=-1, keepdims=True)                       # masked row max
        p = adjg * jnp.exp(score - m)                                    # dup-edge exact
        denom = jnp.sum(p, axis=-1, keepdims=True)
        alpha = p * pl.reciprocal(jnp.maximum(denom, 1e-20), approx=True)
        # attention dropout is identity in eval mode
        head_aggr.append(jnp.dot(alpha.astype(bf16), xl.astype(bf16),
                                 preferred_element_type=f32))            # [Nd, hidden]

    pad = HC_P - heads * hidden
    if pad > 0:
        head_aggr.append(jnp.zeros((n, pad), f32))
    aggr_all = jnp.concatenate(head_aggr, axis=-1)                       # [N, HC_P]
    gat = jnp.maximum(aggr_all + res_all + g_bias_ref[...], 0.0)
    gatb = gat.astype(bf16)

    # ---- conv2: GraphConv over the lane-packed head concat + ReLU ---------
    rel = jnp.dot(gatb, c2_wrel_ref[...], preferred_element_type=f32)    # [N, H_P]
    root = jnp.dot(gatb, c2_wroot_ref[...], preferred_element_type=f32)  # [N, H_P]
    h2 = (jnp.dot(adj, rel.astype(bf16), preferred_element_type=f32)
          + c2_brel_ref[...] + root)
    h2 = jnp.maximum(h2, 0.0)                                            # [N, H_P]

    # ---- global_add_pool + fc1 + ReLU + fc2 -------------------------------
    pool = pool_ref[0]                                                   # [8, N] mask rows
    pooled = jnp.dot(pool, h2.astype(bf16), preferred_element_type=f32)  # [8, H_P]
    hid = jnp.maximum(
        jnp.dot(pooled.astype(bf16), fc1_w_ref[...], preferred_element_type=f32)
        + fc1_b_ref[...], 0.0)
    # F.dropout(p=dropout_forward) is identity in eval mode.
    out = (jnp.dot(hid.astype(bf16), fc2_w_ref[...], preferred_element_type=f32)
           + fc2_b_ref[...])
    o_ref[0] = out                                                       # [8, OUT_P]


# ---------------------------------------------------------------------------
# Parameter init (module-native layout) and packed / padded conversion
# ---------------------------------------------------------------------------
def _glorot(key, shape):
    fan_in, fan_out = shape
    lim = (6.0 / (fan_in + fan_out)) ** 0.5
    return jax.random.uniform(key, shape, jnp.float32, -lim, lim)


def init_params(key, in_channels, hidden, out_channels, heads):
    ks = jax.random.split(key, 10)
    hc = hidden * heads
    return {
        # conv1: GraphConv(in_channels, hidden) (lin_rel has bias, lin_root no bias)
        'conv1_w_rel': _glorot(ks[0], (in_channels, hidden)),
        'conv1_b_rel': jnp.zeros((1, hidden), jnp.float32),
        'conv1_w_root': _glorot(ks[1], (in_channels, hidden)),
        # gat1: GATv2Conv(hidden, hidden, heads, residual=True, concat=True)
        'gat1_wl': _glorot(ks[2], (hidden, hc)),
        'gat1_bl': jnp.zeros((1, hc), jnp.float32),
        'gat1_wr': _glorot(ks[3], (hidden, hc)),
        'gat1_br': jnp.zeros((1, hc), jnp.float32),
        'gat1_att': _glorot(ks[4], (heads, hidden)),
        'gat1_wres': _glorot(ks[5], (hidden, hc)),
        'gat1_bias': jnp.zeros((1, hc), jnp.float32),
        # conv2: GraphConv(hidden*heads, hidden)
        'conv2_w_rel': _glorot(ks[6], (hc, hidden)),
        'conv2_b_rel': jnp.zeros((1, hidden), jnp.float32),
        'conv2_w_root': _glorot(ks[7], (hc, hidden)),
        # fc1 / fc2
        'fc1_w': _glorot(ks[8], (hidden, hidden)),
        'fc1_b': jnp.zeros((1, hidden), jnp.float32),
        'fc2_w': _glorot(ks[9], (hidden, out_channels)),
        'fc2_b': jnp.zeros((1, out_channels), jnp.float32),
    }


def _pad_to(a, shape):
    out = jnp.zeros(shape, a.dtype)
    return out.at[tuple(slice(0, s) for s in a.shape)].set(a)


def prepare_packed_params(params, *, hidden, heads):
    """Module-native weights -> lane-packed / zero-padded bf16 operands."""
    bf16 = jnp.bfloat16
    hc = hidden * heads
    assert hidden <= H_P and hc <= HC_P
    p = {}
    in_ch = params['conv1_w_rel'].shape[0]
    p['c1_wrel'] = _pad_to(params['conv1_w_rel'], (in_ch, H_P)).astype(bf16)
    p['c1_brel'] = _pad_to(params['conv1_b_rel'], (1, H_P))
    p['c1_wroot'] = _pad_to(params['conv1_w_root'], (in_ch, H_P)).astype(bf16)
    # GATv2 weights: PyG output ordering is already head-major along lanes
    # [head0 c0..c31 | head1 ... | head2 ...] -> just zero-pad to 128 lanes.
    p['g_wl'] = _pad_to(params['gat1_wl'], (H_P, HC_P)).astype(bf16)
    p['g_bl'] = _pad_to(params['gat1_bl'], (1, HC_P))
    p['g_wr'] = _pad_to(params['gat1_wr'], (H_P, HC_P)).astype(bf16)
    p['g_br'] = _pad_to(params['gat1_br'], (1, HC_P))
    p['g_att'] = params['gat1_att'][:, None, :]            # (heads, 1, hidden) f32
    p['g_wres'] = _pad_to(params['gat1_wres'], (H_P, HC_P)).astype(bf16)
    p['g_bias'] = _pad_to(params['gat1_bias'], (1, HC_P))
    p['c2_wrel'] = _pad_to(params['conv2_w_rel'], (HC_P, H_P)).astype(bf16)
    p['c2_brel'] = _pad_to(params['conv2_b_rel'], (1, H_P))
    p['c2_wroot'] = _pad_to(params['conv2_w_root'], (HC_P, H_P)).astype(bf16)
    p['fc1_w'] = _pad_to(params['fc1_w'], (H_P, H_P)).astype(bf16)
    p['fc1_b'] = _pad_to(params['fc1_b'], (1, H_P))
    p['fc2_w'] = _pad_to(params['fc2_w'], (H_P, OUT_P)).astype(bf16)
    p['fc2_b'] = _pad_to(params['fc2_b'], (1, OUT_P))
    return p


# ---------------------------------------------------------------------------
# Forward wrapper: one fused pallas_call with a per-graph parallel grid
# ---------------------------------------------------------------------------
def carate_forward(params, x, edge_index, batch, num_graphs, *, hidden, heads,
                   out_channels, max_nodes):
    n_total, in_ch = x.shape
    g = num_graphs
    max_n = -(-max_nodes // 8) * 8   # sublane-align per-graph node slots

    # Per-graph dense packing (PyG batches are contiguous & sorted by graph,
    # and edges never cross graphs).
    counts = jnp.zeros((g,), jnp.int32).at[batch].add(1)
    starts = jnp.concatenate([jnp.zeros((1,), jnp.int32), jnp.cumsum(counts)[:-1]])
    local = jnp.arange(n_total, dtype=jnp.int32) - starts[batch]

    xg = jnp.zeros((g, max_n, in_ch), jnp.float32).at[batch, local].set(x)
    src, dst = edge_index[0], edge_index[1]
    eg = batch[dst]
    adj = (jnp.zeros((g, max_n, max_n), jnp.float32)
           .at[eg, local[dst], local[src]].add(1.0))        # A[g, dst, src]
    nodemask = jnp.zeros((g, max_n), jnp.float32).at[batch, local].set(1.0)
    pool = jnp.broadcast_to(nodemask[:, None, :], (g, POOL_ROWS, max_n))

    pp = prepare_packed_params(params, hidden=hidden, heads=heads)

    def _graph_spec(shape):
        nd = len(shape)
        return pl.BlockSpec((1,) + tuple(shape[1:]),
                            lambda gi, _n=nd: (gi,) + (0,) * (_n - 1))

    def _const_spec(shape):
        nd = len(shape)
        return pl.BlockSpec(tuple(shape), lambda gi, _n=nd: (0,) * _n)

    operands = [
        xg.astype(jnp.bfloat16), adj.astype(jnp.bfloat16), pool.astype(jnp.bfloat16),
        pp['c1_wrel'], pp['c1_brel'], pp['c1_wroot'],
        pp['g_wl'], pp['g_bl'], pp['g_wr'], pp['g_br'], pp['g_att'],
        pp['g_wres'], pp['g_bias'],
        pp['c2_wrel'], pp['c2_brel'], pp['c2_wroot'],
        pp['fc1_w'], pp['fc1_b'], pp['fc2_w'], pp['fc2_b'],
    ]
    in_specs = ([_graph_spec(operands[0].shape),
                 _graph_spec(operands[1].shape),
                 _graph_spec(operands[2].shape)]
                + [_const_spec(o.shape) for o in operands[3:]])

    kern = functools.partial(_carate_kernel, heads=heads, hidden=hidden,
                             negative_slope=0.2)
    out_p = pl.pallas_call(
        kern,
        out_shape=jax.ShapeDtypeStruct((g, POOL_ROWS, OUT_P), jnp.float32),
        grid=(g,),
        in_specs=in_specs,
        out_specs=pl.BlockSpec((1, POOL_ROWS, OUT_P), lambda gi: (gi, 0, 0)),
        compiler_params=pltpu.CompilerParams(
            dimension_semantics=("parallel",),     # both TensorCores on v7x
            vmem_limit_bytes=48 << 20),            # below v7x 64 MiB physical
    )(*operands)
    return out_p[:, 0, :out_channels]


if __name__ == "__main__":
    key = jax.random.PRNGKey(0)
    k_x, k_e, k_par = jax.random.split(key, 3)

    # small shapes consistent with the module (hidden=32 stand-in, heads=3)
    N, IN_CH, HIDDEN, OUT_CH, HEADS, NUM_GRAPHS = 16, 8, 32, 4, 3, 2
    EDGES_PER_GRAPH = 24
    nodes_per_graph = N // NUM_GRAPHS

    x = jax.random.normal(k_x, (N, IN_CH), jnp.float32)
    # edges stay within their graph (as in a real PyG batch)
    ekeys = jax.random.split(k_e, 2 * NUM_GRAPHS)
    srcs, dsts = [], []
    for gi in range(NUM_GRAPHS):
        base = gi * nodes_per_graph
        srcs.append(jax.random.randint(ekeys[2 * gi], (EDGES_PER_GRAPH,),
                                       0, nodes_per_graph) + base)
        dsts.append(jax.random.randint(ekeys[2 * gi + 1], (EDGES_PER_GRAPH,),
                                       0, nodes_per_graph) + base)
    edge_index = jnp.stack([jnp.concatenate(srcs), jnp.concatenate(dsts)])  # [2, E]
    batch = jnp.repeat(jnp.arange(NUM_GRAPHS, dtype=jnp.int32), nodes_per_graph)

    params = init_params(k_par, IN_CH, HIDDEN, OUT_CH, HEADS)

    out = carate_forward(params, x, edge_index, batch, NUM_GRAPHS,
                         hidden=HIDDEN, heads=HEADS, out_channels=OUT_CH,
                         max_nodes=nodes_per_graph)
    out = jax.block_until_ready(out)

    assert out.shape == (NUM_GRAPHS, OUT_CH), out.shape
    assert bool(jnp.all(jnp.isfinite(out)))
    print("KERNEL_OK")
</pallas_src>

<mosaic_0001>
module attributes {stable_mosaic.version = 11 : i64} {
  func.func @_carate_kernel(%arg0: i32, %arg1: memref<1x8x8xbf16, #tpu.memory_space<vmem>>, %arg2: memref<1x8x8xbf16, #tpu.memory_space<vmem>>, %arg3: memref<1x8x8xbf16, #tpu.memory_space<vmem>>, %arg4: memref<8x128xbf16, #tpu.memory_space<vmem>>, %arg5: memref<1x128xf32, #tpu.memory_space<vmem>>, %arg6: memref<8x128xbf16, #tpu.memory_space<vmem>>, %arg7: memref<128x128xbf16, #tpu.memory_space<vmem>>, %arg8: memref<1x128xf32, #tpu.memory_space<vmem>>, %arg9: memref<128x128xbf16, #tpu.memory_space<vmem>>, %arg10: memref<1x128xf32, #tpu.memory_space<vmem>>, %arg11: memref<3x1x32xf32, #tpu.memory_space<vmem>>, %arg12: memref<128x128xbf16, #tpu.memory_space<vmem>>, %arg13: memref<1x128xf32, #tpu.memory_space<vmem>>, %arg14: memref<128x128xbf16, #tpu.memory_space<vmem>>, %arg15: memref<1x128xf32, #tpu.memory_space<vmem>>, %arg16: memref<128x128xbf16, #tpu.memory_space<vmem>>, %arg17: memref<128x128xbf16, #tpu.memory_space<vmem>>, %arg18: memref<1x128xf32, #tpu.memory_space<vmem>>, %arg19: memref<128x128xbf16, #tpu.memory_space<vmem>>, %arg20: memref<1x128xf32, #tpu.memory_space<vmem>>, %arg21: memref<1x8x128xf32, #tpu.memory_space<vmem>>) attributes {dimension_semantics = [#tpu.dimension_semantics<parallel>], iteration_bounds = array<i64: 2>, scalar_prefetch = 0 : i64, scratch_operands = 0 : i64, tpu.core_type = #tpu.core_type<tc>, window_params = [{transform_indices = @transform_0, window_bounds = array<i64: 1, 8, 8>}, {transform_indices = @transform_1, window_bounds = array<i64: 1, 8, 8>}, {transform_indices = @transform_2, window_bounds = array<i64: 1, 8, 8>}, {pipeline_mode = #tpu.pipeline_mode<synchronous>, transform_indices = @transform_3, window_bounds = array<i64: 8, 128>}, {pipeline_mode = #tpu.pipeline_mode<synchronous>, transform_indices = @transform_4, window_bounds = array<i64: 1, 128>}, {pipeline_mode = #tpu.pipeline_mode<synchronous>, transform_indices = @transform_5, window_bounds = array<i64: 8, 128>}, {pipeline_mode = #tpu.pipeline_mode<synchronous>, transform_indices = @transform_6, window_bounds = array<i64: 128, 128>}, {pipeline_mode = #tpu.pipeline_mode<synchronous>, transform_indices = @transform_7, window_bounds = array<i64: 1, 128>}, {pipeline_mode = #tpu.pipeline_mode<synchronous>, transform_indices = @transform_8, window_bounds = array<i64: 128, 128>}, {pipeline_mode = #tpu.pipeline_mode<synchronous>, transform_indices = @transform_9, window_bounds = array<i64: 1, 128>}, {pipeline_mode = #tpu.pipeline_mode<synchronous>, transform_indices = @transform_10, window_bounds = array<i64: 3, 1, 32>}, {pipeline_mode = #tpu.pipeline_mode<synchronous>, transform_indices = @transform_11, window_bounds = array<i64: 128, 128>}, {pipeline_mode = #tpu.pipeline_mode<synchronous>, transform_indices = @transform_12, window_bounds = array<i64: 1, 128>}, {pipeline_mode = #tpu.pipeline_mode<synchronous>, transform_indices = @transform_13, window_bounds = array<i64: 128, 128>}, {pipeline_mode = #tpu.pipeline_mode<synchronous>, transform_indices = @transform_14, window_bounds = array<i64: 1, 128>}, {pipeline_mode = #tpu.pipeline_mode<synchronous>, transform_indices = @transform_15, window_bounds = array<i64: 128, 128>}, {pipeline_mode = #tpu.pipeline_mode<synchronous>, transform_indices = @transform_16, window_bounds = array<i64: 128, 128>}, {pipeline_mode = #tpu.pipeline_mode<synchronous>, transform_indices = @transform_17, window_bounds = array<i64: 1, 128>}, {pipeline_mode = #tpu.pipeline_mode<synchronous>, transform_indices = @transform_18, window_bounds = array<i64: 128, 128>}, {pipeline_mode = #tpu.pipeline_mode<synchronous>, transform_indices = @transform_19, window_bounds = array<i64: 1, 128>}, {transform_indices = @transform_20, window_bounds = array<i64: 1, 8, 128>}]} {
    %c0 = arith.constant 0 : index
    %c0_0 = arith.constant 0 : index
    %c0_1 = arith.constant 0 : index
    %0 = vector.load %arg1[%c0, %c0_0, %c0_1] : memref<1x8x8xbf16, #tpu.memory_space<vmem>>, vector<1x8x8xbf16>
    %1 = vector.shape_cast %0 : vector<1x8x8xbf16> to vector<8x8xbf16>
    %c0_2 = arith.constant 0 : index
    %c0_3 = arith.constant 0 : index
    %c0_4 = arith.constant 0 : index
    %2 = vector.load %arg2[%c0_2, %c0_3, %c0_4] : memref<1x8x8xbf16, #tpu.memory_space<vmem>>, vector<1x8x8xbf16>
    %3 = vector.shape_cast %2 : vector<1x8x8xbf16> to vector<8x8xbf16>
    %cst = arith.constant dense<0.000000e+00> : vector<8x8xf32>
    %4 = tpu.matmul %3, %1, %cst {dimension_numbers = #tpu.dot_dimension_numbers<[1], [0], [0], [1], [0, 0, 1, 1], [], []>} : vector<8x8xbf16>, vector<8x8xbf16>, vector<8x8xf32> -> vector<8x8xf32>
    %5 = arith.truncf %4 : vector<8x8xf32> to vector<8x8xbf16>
    %c0_5 = arith.constant 0 : index
    %c0_6 = arith.constant 0 : index
    %6 = vector.load %arg4[%c0_5, %c0_6] : memref<8x128xbf16, #tpu.memory_space<vmem>>, vector<8x128xbf16>
    %cst_7 = arith.constant dense<0.000000e+00> : vector<8x128xf32>
    %7 = tpu.matmul %5, %6, %cst_7 {dimension_numbers = #tpu.dot_dimension_numbers<[1], [0], [0], [1], [0, 0, 1, 1], [], []>} : vector<8x8xbf16>, vector<8x128xbf16>, vector<8x128xf32> -> vector<8x128xf32>
    %c0_8 = arith.constant 0 : index
    %c0_9 = arith.constant 0 : index
    %8 = vector.load %arg5[%c0_8, %c0_9] : memref<1x128xf32, #tpu.memory_space<vmem>>, vector<1x128xf32>
    %9 = vector.broadcast %8 : vector<1x128xf32> to vector<8x128xf32>
    %10 = arith.addf %7, %9 : vector<8x128xf32>
    %c0_10 = arith.constant 0 : index
    %c0_11 = arith.constant 0 : index
    %11 = vector.load %arg6[%c0_10, %c0_11] : memref<8x128xbf16, #tpu.memory_space<vmem>>, vector<8x128xbf16>
    %cst_12 = arith.constant dense<0.000000e+00> : vector<8x128xf32>
    %12 = tpu.matmul %1, %11, %cst_12 {dimension_numbers = #tpu.dot_dimension_numbers<[1], [0], [0], [1], [0, 0, 1, 1], [], []>} : vector<8x8xbf16>, vector<8x128xbf16>, vector<8x128xf32> -> vector<8x128xf32>
    %13 = arith.addf %10, %12 : vector<8x128xf32>
    %cst_13 = arith.constant 0.000000e+00 : f32
    %14 = vector.broadcast %cst_13 : f32 to vector<8x128xf32>
    %15 = arith.maximumf %13, %14 : vector<8x128xf32>
    %16 = arith.truncf %15 : vector<8x128xf32> to vector<8x128xbf16>
    %c0_14 = arith.constant 0 : index
    %c0_15 = arith.constant 0 : index
    %17 = vector.load %arg7[%c0_14, %c0_15] : memref<128x128xbf16, #tpu.memory_space<vmem>>, vector<128x128xbf16>
    %cst_16 = arith.constant dense<0.000000e+00> : vector<8x128xf32>
    %18 = tpu.matmul %16, %17, %cst_16 {dimension_numbers = #tpu.dot_dimension_numbers<[1], [0], [0], [1], [0, 0, 1, 1], [], []>} : vector<8x128xbf16>, vector<128x128xbf16>, vector<8x128xf32> -> vector<8x128xf32>
    %c0_17 = arith.constant 0 : index
    %c0_18 = arith.constant 0 : index
    %19 = vector.load %arg8[%c0_17, %c0_18] : memref<1x128xf32, #tpu.memory_space<vmem>>, vector<1x128xf32>
    %20 = vector.broadcast %19 : vector<1x128xf32> to vector<8x128xf32>
    %21 = arith.addf %18, %20 : vector<8x128xf32>
    %c0_19 = arith.constant 0 : index
    %c0_20 = arith.constant 0 : index
    %22 = vector.load %arg9[%c0_19, %c0_20] : memref<128x128xbf16, #tpu.memory_space<vmem>>, vector<128x128xbf16>
    %cst_21 = arith.constant dense<0.000000e+00> : vector<8x128xf32>
    %23 = tpu.matmul %16, %22, %cst_21 {dimension_numbers = #tpu.dot_dimension_numbers<[1], [0], [0], [1], [0, 0, 1, 1], [], []>} : vector<8x128xbf16>, vector<128x128xbf16>, vector<8x128xf32> -> vector<8x128xf32>
    %c0_22 = arith.constant 0 : index
    %c0_23 = arith.constant 0 : index
    %24 = vector.load %arg10[%c0_22, %c0_23] : memref<1x128xf32, #tpu.memory_space<vmem>>, vector<1x128xf32>
    %25 = vector.broadcast %24 : vector<1x128xf32> to vector<8x128xf32>
    %26 = arith.addf %23, %25 : vector<8x128xf32>
    %c0_24 = arith.constant 0 : index
    %c0_25 = arith.constant 0 : index
    %27 = vector.load %arg12[%c0_24, %c0_25] : memref<128x128xbf16, #tpu.memory_space<vmem>>, vector<128x128xbf16>
    %cst_26 = arith.constant dense<0.000000e+00> : vector<8x128xf32>
    %28 = tpu.matmul %16, %27, %cst_26 {dimension_numbers = #tpu.dot_dimension_numbers<[1], [0], [0], [1], [0, 0, 1, 1], [], []>} : vector<8x128xbf16>, vector<128x128xbf16>, vector<8x128xf32> -> vector<8x128xf32>
    %29 = tpu.iota {dimensions = array<i32: 0>} : vector<8x8xi32>
    %30 = tpu.iota {dimensions = array<i32: 1>} : vector<8x8xi32>
    %31 = arith.cmpi eq, %29, %30 : vector<8x8xi32>
    %32 = arith.extf %3 : vector<8x8xbf16> to vector<8x8xf32>
    %cst_27 = arith.constant 1.000000e+00 : f32
    %33 = vector.broadcast %cst_27 : f32 to vector<8x8xf32>
    %34 = arith.select %31, %33, %32 : vector<8x8xi1>, vector<8x8xf32>
    %cst_28 = arith.constant 0.000000e+00 : f32
    %35 = vector.broadcast %cst_28 : f32 to vector<8x8xf32>
    %36 = arith.cmpf ogt, %34, %35 : vector<8x8xf32>
    %37 = vector.extract_strided_slice %21 {offsets = [0, 0], sizes = [8, 32], strides = [1, 1]} : vector<8x128xf32> to vector<8x32xf32>
    %38 = vector.extract_strided_slice %26 {offsets = [0, 0], sizes = [8, 32], strides = [1, 1]} : vector<8x128xf32> to vector<8x32xf32>
    %c0_29 = arith.constant 0 : index
    %c0_30 = arith.constant 0 : index
    %c0_31 = arith.constant 0 : index
    %39 = vector.load %arg11[%c0_29, %c0_30, %c0_31] : memref<3x1x32xf32, #tpu.memory_space<vmem>>, vector<1x1x32xf32>
    %40 = vector.shape_cast %39 : vector<1x1x32xf32> to vector<1x32xf32>
    %41 = vector.shape_cast %38 : vector<8x32xf32> to vector<8x1x32xf32>
    %42 = vector.shape_cast %37 : vector<8x32xf32> to vector<1x8x32xf32>
    %43 = vector.broadcast %41 : vector<8x1x32xf32> to vector<8x8x32xf32>
    %44 = vector.broadcast %42 : vector<1x8x32xf32> to vector<8x8x32xf32>
    %45 = arith.addf %43, %44 : vector<8x8x32xf32>
    %cst_32 = arith.constant 0.000000e+00 : f32
    %46 = vector.broadcast %cst_32 : f32 to vector<8x8x32xf32>
    %47 = arith.cmpf ogt, %45, %46 : vector<8x8x32xf32>
    %cst_33 = arith.constant 2.000000e-01 : f32
    %48 = vector.broadcast %cst_33 : f32 to vector<8x8x32xf32>
    %49 = arith.mulf %48, %45 : vector<8x8x32xf32>
    %50 = arith.select %47, %45, %49 : vector<8x8x32xi1>, vector<8x8x32xf32>
    %51 = vector.shape_cast %40 : vector<1x32xf32> to vector<1x1x32xf32>
    %52 = vector.broadcast %51 : vector<1x1x32xf32> to vector<8x8x32xf32>
    %53 = arith.mulf %50, %52 : vector<8x8x32xf32>
    %cst_34 = arith.constant dense<0.000000e+00> : vector<8x8xf32>
    %54 = vector.multi_reduction <add>, %53, %cst_34 [2] : vector<8x8x32xf32> to vector<8x8xf32>
    %cst_35 = arith.constant -1.000000e+30 : f32
    %55 = vector.broadcast %cst_35 : f32 to vector<8x8xf32>
    %56 = arith.select %36, %54, %55 : vector<8x8xi1>, vector<8x8xf32>
    %cst_36 = arith.constant dense<0xFF800000> : vector<8xf32>
    %57 = vector.multi_reduction <maximumf>, %56, %cst_36 [1] : vector<8x8xf32> to vector<8xf32>
    %58 = vector.shape_cast %57 : vector<8xf32> to vector<8x1xf32>
    %59 = vector.broadcast %58 : vector<8x1xf32> to vector<8x8xf32>
    %60 = arith.subf %56, %59 : vector<8x8xf32>
    %61 = math.exp %60 : vector<8x8xf32>
    %62 = arith.mulf %34, %61 : vector<8x8xf32>
    %cst_37 = arith.constant dense<0.000000e+00> : vector<8xf32>
    %63 = vector.multi_reduction <add>, %62, %cst_37 [1] : vector<8x8xf32> to vector<8xf32>
    %64 = vector.shape_cast %63 : vector<8xf32> to vector<8x1xf32>
    %cst_38 = arith.constant 9.99999968E-21 : f32
    %65 = vector.broadcast %cst_38 : f32 to vector<8x1xf32>
    %66 = arith.maximumf %64, %65 : vector<8x1xf32>
    %67 = tpu.reciprocal %66 {approx = true} : vector<8x1xf32> -> vector<8x1xf32>
    %68 = vector.broadcast %67 : vector<8x1xf32> to vector<8x8xf32>
    %69 = arith.mulf %62, %68 : vector<8x8xf32>
    %70 = arith.truncf %69 : vector<8x8xf32> to vector<8x8xbf16>
    %71 = arith.truncf %37 : vector<8x32xf32> to vector<8x32xbf16>
    %cst_39 = arith.constant dense<0.000000e+00> : vector<8x32xf32>
    %72 = tpu.matmul %70, %71, %cst_39 {dimension_numbers = #tpu.dot_dimension_numbers<[1], [0], [0], [1], [0, 0, 1, 1], [], []>} : vector<8x8xbf16>, vector<8x32xbf16>, vector<8x32xf32> -> vector<8x32xf32>
    %73 = vector.extract_strided_slice %21 {offsets = [0, 32], sizes = [8, 32], strides = [1, 1]} : vector<8x128xf32> to vector<8x32xf32>
    %74 = vector.extract_strided_slice %26 {offsets = [0, 32], sizes = [8, 32], strides = [1, 1]} : vector<8x128xf32> to vector<8x32xf32>
    %c1 = arith.constant 1 : index
    %c0_40 = arith.constant 0 : index
    %c0_41 = arith.constant 0 : index
    %75 = vector.load %arg11[%c1, %c0_40, %c0_41] : memref<3x1x32xf32, #tpu.memory_space<vmem>>, vector<1x1x32xf32>
    %76 = vector.shape_cast %75 : vector<1x1x32xf32> to vector<1x32xf32>
    %77 = vector.shape_cast %74 : vector<8x32xf32> to vector<8x1x32xf32>
    %78 = vector.shape_cast %73 : vector<8x32xf32> to vector<1x8x32xf32>
    %79 = vector.broadcast %77 : vector<8x1x32xf32> to vector<8x8x32xf32>
    %80 = vector.broadcast %78 : vector<1x8x32xf32> to vector<8x8x32xf32>
    %81 = arith.addf %79, %80 : vector<8x8x32xf32>
    %cst_42 = arith.constant 0.000000e+00 : f32
    %82 = vector.broadcast %cst_42 : f32 to vector<8x8x32xf32>
    %83 = arith.cmpf ogt, %81, %82 : vector<8x8x32xf32>
    %cst_43 = arith.constant 2.000000e-01 : f32
    %84 = vector.broadcast %cst_43 : f32 to vector<8x8x32xf32>
    %85 = arith.mulf %84, %81 : vector<8x8x32xf32>
    %86 = arith.select %83, %81, %85 : vector<8x8x32xi1>, vector<8x8x32xf32>
    %87 = vector.shape_cast %76 : vector<1x32xf32> to vector<1x1x32xf32>
    %88 = vector.broadcast %87 : vector<1x1x32xf32> to vector<8x8x32xf32>
    %89 = arith.mulf %86, %88 : vector<8x8x32xf32>
    %cst_44 = arith.constant dense<0.000000e+00> : vector<8x8xf32>
    %90 = vector.multi_reduction <add>, %89, %cst_44 [2] : vector<8x8x32xf32> to vector<8x8xf32>
    %cst_45 = arith.constant -1.000000e+30 : f32
    %91 = vector.broadcast %cst_45 : f32 to vector<8x8xf32>
    %92 = arith.select %36, %90, %91 : vector<8x8xi1>, vector<8x8xf32>
    %cst_46 = arith.constant dense<0xFF800000> : vector<8xf32>
    %93 = vector.multi_reduction <maximumf>, %92, %cst_46 [1] : vector<8x8xf32> to vector<8xf32>
    %94 = vector.shape_cast %93 : vector<8xf32> to vector<8x1xf32>
    %95 = vector.broadcast %94 : vector<8x1xf32> to vector<8x8xf32>
    %96 = arith.subf %92, %95 : vector<8x8xf32>
    %97 = math.exp %96 : vector<8x8xf32>
    %98 = arith.mulf %34, %97 : vector<8x8xf32>
    %cst_47 = arith.constant dense<0.000000e+00> : vector<8xf32>
    %99 = vector.multi_reduction <add>, %98, %cst_47 [1] : vector<8x8xf32> to vector<8xf32>
    %100 = vector.shape_cast %99 : vector<8xf32> to vector<8x1xf32>
    %cst_48 = arith.constant 9.99999968E-21 : f32
    %101 = vector.broadcast %cst_48 : f32 to vector<8x1xf32>
    %102 = arith.maximumf %100, %101 : vector<8x1xf32>
    %103 = tpu.reciprocal %102 {approx = true} : vector<8x1xf32> -> vector<8x1xf32>
    %104 = vector.broadcast %103 : vector<8x1xf32> to vector<8x8xf32>
    %105 = arith.mulf %98, %104 : vector<8x8xf32>
    %106 = arith.truncf %105 : vector<8x8xf32> to vector<8x8xbf16>
    %107 = arith.truncf %73 : vector<8x32xf32> to vector<8x32xbf16>
    %cst_49 = arith.constant dense<0.000000e+00> : vector<8x32xf32>
    %108 = tpu.matmul %106, %107, %cst_49 {dimension_numbers = #tpu.dot_dimension_numbers<[1], [0], [0], [1], [0, 0, 1, 1], [], []>} : vector<8x8xbf16>, vector<8x32xbf16>, vector<8x32xf32> -> vector<8x32xf32>
    %109 = vector.extract_strided_slice %21 {offsets = [0, 64], sizes = [8, 32], strides = [1, 1]} : vector<8x128xf32> to vector<8x32xf32>
    %110 = vector.extract_strided_slice %26 {offsets = [0, 64], sizes = [8, 32], strides = [1, 1]} : vector<8x128xf32> to vector<8x32xf32>
    %c2 = arith.constant 2 : index
    %c0_50 = arith.constant 0 : index
    %c0_51 = arith.constant 0 : index
    %111 = vector.load %arg11[%c2, %c0_50, %c0_51] : memref<3x1x32xf32, #tpu.memory_space<vmem>>, vector<1x1x32xf32>
    %112 = vector.shape_cast %111 : vector<1x1x32xf32> to vector<1x32xf32>
    %113 = vector.shape_cast %110 : vector<8x32xf32> to vector<8x1x32xf32>
    %114 = vector.shape_cast %109 : vector<8x32xf32> to vector<1x8x32xf32>
    %115 = vector.broadcast %113 : vector<8x1x32xf32> to vector<8x8x32xf32>
    %116 = vector.broadcast %114 : vector<1x8x32xf32> to vector<8x8x32xf32>
    %117 = arith.addf %115, %116 : vector<8x8x32xf32>
    %cst_52 = arith.constant 0.000000e+00 : f32
    %118 = vector.broadcast %cst_52 : f32 to vector<8x8x32xf32>
    %119 = arith.cmpf ogt, %117, %118 : vector<8x8x32xf32>
    %cst_53 = arith.constant 2.000000e-01 : f32
    %120 = vector.broadcast %cst_53 : f32 to vector<8x8x32xf32>
    %121 = arith.mulf %120, %117 : vector<8x8x32xf32>
    %122 = arith.select %119, %117, %121 : vector<8x8x32xi1>, vector<8x8x32xf32>
    %123 = vector.shape_cast %112 : vector<1x32xf32> to vector<1x1x32xf32>
    %124 = vector.broadcast %123 : vector<1x1x32xf32> to vector<8x8x32xf32>
    %125 = arith.mulf %122, %124 : vector<8x8x32xf32>
    %cst_54 = arith.constant dense<0.000000e+00> : vector<8x8xf32>
    %126 = vector.multi_reduction <add>, %125, %cst_54 [2] : vector<8x8x32xf32> to vector<8x8xf32>
    %cst_55 = arith.constant -1.000000e+30 : f32
    %127 = vector.broadcast %cst_55 : f32 to vector<8x8xf32>
    %128 = arith.select %36, %126, %127 : vector<8x8xi1>, vector<8x8xf32>
    %cst_56 = arith.constant dense<0xFF800000> : vector<8xf32>
    %129 = vector.multi_reduction <maximumf>, %128, %cst_56 [1] : vector<8x8xf32> to vector<8xf32>
    %130 = vector.shape_cast %129 : vector<8xf32> to vector<8x1xf32>
    %131 = vector.broadcast %130 : vector<8x1xf32> to vector<8x8xf32>
    %132 = arith.subf %128, %131 : vector<8x8xf32>
    %133 = math.exp %132 : vector<8x8xf32>
    %134 = arith.mulf %34, %133 : vector<8x8xf32>
    %cst_57 = arith.constant dense<0.000000e+00> : vector<8xf32>
    %135 = vector.multi_reduction <add>, %134, %cst_57 [1] : vector<8x8xf32> to vector<8xf32>
    %136 = vector.shape_cast %135 : vector<8xf32> to vector<8x1xf32>
    %cst_58 = arith.constant 9.99999968E-21 : f32
    %137 = vector.broadcast %cst_58 : f32 to vector<8x1xf32>
    %138 = arith.maximumf %136, %137 : vector<8x1xf32>
    %139 = tpu.reciprocal %138 {approx = true} : vector<8x1xf32> -> vector<8x1xf32>
    %140 = vector.broadcast %139 : vector<8x1xf32> to vector<8x8xf32>
    %141 = arith.mulf %134, %140 : vector<8x8xf32>
    %142 = arith.truncf %141 : vector<8x8xf32> to vector<8x8xbf16>
    %143 = arith.truncf %109 : vector<8x32xf32> to vector<8x32xbf16>
    %cst_59 = arith.constant dense<0.000000e+00> : vector<8x32xf32>
    %144 = tpu.matmul %142, %143, %cst_59 {dimension_numbers = #tpu.dot_dimension_numbers<[1], [0], [0], [1], [0, 0, 1, 1], [], []>} : vector<8x8xbf16>, vector<8x32xbf16>, vector<8x32xf32> -> vector<8x32xf32>
    %cst_60 = arith.constant 0.000000e+00 : f32
    %145 = vector.broadcast %cst_60 : f32 to vector<8x32xf32>
    %146 = tpu.concatenate %72, %108, %144, %145 in 1 : vector<8x32xf32>, vector<8x32xf32>, vector<8x32xf32>, vector<8x32xf32> -> vector<8x128xf32>
    %147 = arith.addf %146, %28 : vector<8x128xf32>
    %c0_61 = arith.constant 0 : index
    %c0_62 = arith.constant 0 : index
    %148 = vector.load %arg13[%c0_61, %c0_62] : memref<1x128xf32, #tpu.memory_space<vmem>>, vector<1x128xf32>
    %149 = vector.broadcast %148 : vector<1x128xf32> to vector<8x128xf32>
    %150 = arith.addf %147, %149 : vector<8x128xf32>
    %cst_63 = arith.constant 0.000000e+00 : f32
    %151 = vector.broadcast %cst_63 : f32 to vector<8x128xf32>
    %152 = arith.maximumf %150, %151 : vector<8x128xf32>
    %153 = arith.truncf %152 : vector<8x128xf32> to vector<8x128xbf16>
    %c0_64 = arith.constant 0 : index
    %c0_65 = arith.constant 0 : index
    %154 = vector.load %arg14[%c0_64, %c0_65] : memref<128x128xbf16, #tpu.memory_space<vmem>>, vector<128x128xbf16>
    %cst_66 = arith.constant dense<0.000000e+00> : vector<8x128xf32>
    %155 = tpu.matmul %153, %154, %cst_66 {dimension_numbers = #tpu.dot_dimension_numbers<[1], [0], [0], [1], [0, 0, 1, 1], [], []>} : vector<8x128xbf16>, vector<128x128xbf16>, vector<8x128xf32> -> vector<8x128xf32>
    %c0_67 = arith.constant 0 : index
    %c0_68 = arith.constant 0 : index
    %156 = vector.load %arg16[%c0_67, %c0_68] : memref<128x128xbf16, #tpu.memory_space<vmem>>, vector<128x128xbf16>
    %cst_69 = arith.constant dense<0.000000e+00> : vector<8x128xf32>
    %157 = tpu.matmul %153, %156, %cst_69 {dimension_numbers = #tpu.dot_dimension_numbers<[1], [0], [0], [1], [0, 0, 1, 1], [], []>} : vector<8x128xbf16>, vector<128x128xbf16>, vector<8x128xf32> -> vector<8x128xf32>
    %158 = arith.truncf %155 : vector<8x128xf32> to vector<8x128xbf16>
    %cst_70 = arith.constant dense<0.000000e+00> : vector<8x128xf32>
    %159 = tpu.matmul %3, %158, %cst_70 {dimension_numbers = #tpu.dot_dimension_numbers<[1], [0], [0], [1], [0, 0, 1, 1], [], []>} : vector<8x8xbf16>, vector<8x128xbf16>, vector<8x128xf32> -> vector<8x128xf32>
    %c0_71 = arith.constant 0 : index
    %c0_72 = arith.constant 0 : index
    %160 = vector.load %arg15[%c0_71, %c0_72] : memref<1x128xf32, #tpu.memory_space<vmem>>, vector<1x128xf32>
    %161 = vector.broadcast %160 : vector<1x128xf32> to vector<8x128xf32>
    %162 = arith.addf %159, %161 : vector<8x128xf32>
    %163 = arith.addf %162, %157 : vector<8x128xf32>
    %cst_73 = arith.constant 0.000000e+00 : f32
    %164 = vector.broadcast %cst_73 : f32 to vector<8x128xf32>
    %165 = arith.maximumf %163, %164 : vector<8x128xf32>
    %c0_74 = arith.constant 0 : index
    %c0_75 = arith.constant 0 : index
    %c0_76 = arith.constant 0 : index
    %166 = vector.load %arg3[%c0_74, %c0_75, %c0_76] : memref<1x8x8xbf16, #tpu.memory_space<vmem>>, vector<1x8x8xbf16>
    %167 = vector.shape_cast %166 : vector<1x8x8xbf16> to vector<8x8xbf16>
    %168 = arith.truncf %165 : vector<8x128xf32> to vector<8x128xbf16>
    %cst_77 = arith.constant dense<0.000000e+00> : vector<8x128xf32>
    %169 = tpu.matmul %167, %168, %cst_77 {dimension_numbers = #tpu.dot_dimension_numbers<[1], [0], [0], [1], [0, 0, 1, 1], [], []>} : vector<8x8xbf16>, vector<8x128xbf16>, vector<8x128xf32> -> vector<8x128xf32>
    %170 = arith.truncf %169 : vector<8x128xf32> to vector<8x128xbf16>
    %c0_78 = arith.constant 0 : index
    %c0_79 = arith.constant 0 : index
    %171 = vector.load %arg17[%c0_78, %c0_79] : memref<128x128xbf16, #tpu.memory_space<vmem>>, vector<128x128xbf16>
    %cst_80 = arith.constant dense<0.000000e+00> : vector<8x128xf32>
    %172 = tpu.matmul %170, %171, %cst_80 {dimension_numbers = #tpu.dot_dimension_numbers<[1], [0], [0], [1], [0, 0, 1, 1], [], []>} : vector<8x128xbf16>, vector<128x128xbf16>, vector<8x128xf32> -> vector<8x128xf32>
    %c0_81 = arith.constant 0 : index
    %c0_82 = arith.constant 0 : index
    %173 = vector.load %arg18[%c0_81, %c0_82] : memref<1x128xf32, #tpu.memory_space<vmem>>, vector<1x128xf32>
    %174 = vector.broadcast %173 : vector<1x128xf32> to vector<8x128xf32>
    %175 = arith.addf %172, %174 : vector<8x128xf32>
    %cst_83 = arith.constant 0.000000e+00 : f32
    %176 = vector.broadcast %cst_83 : f32 to vector<8x128xf32>
    %177 = arith.maximumf %175, %176 : vector<8x128xf32>
    %178 = arith.truncf %177 : vector<8x128xf32> to vector<8x128xbf16>
    %c0_84 = arith.constant 0 : index
    %c0_85 = arith.constant 0 : index
    %179 = vector.load %arg19[%c0_84, %c0_85] : memref<128x128xbf16, #tpu.memory_space<vmem>>, vector<128x128xbf16>
    %cst_86 = arith.constant dense<0.000000e+00> : vector<8x128xf32>
    %180 = tpu.matmul %178, %179, %cst_86 {dimension_numbers = #tpu.dot_dimension_numbers<[1], [0], [0], [1], [0, 0, 1, 1], [], []>} : vector<8x128xbf16>, vector<128x128xbf16>, vector<8x128xf32> -> vector<8x128xf32>
    %c0_87 = arith.constant 0 : index
    %c0_88 = arith.constant 0 : index
    %181 = vector.load %arg20[%c0_87, %c0_88] : memref<1x128xf32, #tpu.memory_space<vmem>>, vector<1x128xf32>
    %182 = vector.broadcast %181 : vector<1x128xf32> to vector<8x128xf32>
    %183 = arith.addf %180, %182 : vector<8x128xf32>
    %c0_89 = arith.constant 0 : index
    %c0_90 = arith.constant 0 : index
    %c0_91 = arith.constant 0 : index
    %184 = vector.load %arg21[%c0_89, %c0_90, %c0_91] : memref<1x8x128xf32, #tpu.memory_space<vmem>>, vector<1x8x128xf32>
    %185 = vector.shape_cast %184 : vector<1x8x128xf32> to vector<8x128xf32>
    %186 = vector.shape_cast %183 : vector<8x128xf32> to vector<1x8x128xf32>
    tpu.vector_store %arg21[%c0_89, %c0_90, %c0_91], %186 {strides = array<i32>} : memref<1x8x128xf32, #tpu.memory_space<vmem>>, vector<1x8x128xf32>,
    return
  }
  func.func @transform_0(%arg0: i32) -> (i32, i32, i32) {
    %c0_i32 = arith.constant 0 : i32
    %c0_i32_0 = arith.constant 0 : i32
    %c0_i32_1 = arith.constant 0 : i32
    return %arg0, %c0_i32, %c0_i32_0 : i32, i32, i32
  }
  func.func @transform_1(%arg0: i32) -> (i32, i32, i32) {
    %c0_i32 = arith.constant 0 : i32
    %c0_i32_0 = arith.constant 0 : i32
    %c0_i32_1 = arith.constant 0 : i32
    return %arg0, %c0_i32, %c0_i32_0 : i32, i32, i32
  }
  func.func @transform_2(%arg0: i32) -> (i32, i32, i32) {
    %c0_i32 = arith.constant 0 : i32
    %c0_i32_0 = arith.constant 0 : i32
    %c0_i32_1 = arith.constant 0 : i32
    return %arg0, %c0_i32, %c0_i32_0 : i32, i32, i32
  }
  func.func @transform_3(%arg0: i32) -> (i32, i32) {
    %c0_i32 = arith.constant 0 : i32
    %c0_i32_0 = arith.constant 0 : i32
    %c0_i32_1 = arith.constant 0 : i32
    return %c0_i32, %c0_i32_0 : i32, i32
  }
  func.func @transform_4(%arg0: i32) -> (i32, i32) {
    %c0_i32 = arith.constant 0 : i32
    %c0_i32_0 = arith.constant 0 : i32
    %c0_i32_1 = arith.constant 0 : i32
    return %c0_i32, %c0_i32_0 : i32, i32
  }
  func.func @transform_5(%arg0: i32) -> (i32, i32) {
    %c0_i32 = arith.constant 0 : i32
    %c0_i32_0 = arith.constant 0 : i32
    %c0_i32_1 = arith.constant 0 : i32
    return %c0_i32, %c0_i32_0 : i32, i32
  }
  func.func @transform_6(%arg0: i32) -> (i32, i32) {
    %c0_i32 = arith.constant 0 : i32
    %c0_i32_0 = arith.constant 0 : i32
    %c0_i32_1 = arith.constant 0 : i32
    return %c0_i32, %c0_i32_0 : i32, i32
  }
  func.func @transform_7(%arg0: i32) -> (i32, i32) {
    %c0_i32 = arith.constant 0 : i32
    %c0_i32_0 = arith.constant 0 : i32
    %c0_i32_1 = arith.constant 0 : i32
    return %c0_i32, %c0_i32_0 : i32, i32
  }
  func.func @transform_8(%arg0: i32) -> (i32, i32) {
    %c0_i32 = arith.constant 0 : i32
    %c0_i32_0 = arith.constant 0 : i32
    %c0_i32_1 = arith.constant 0 : i32
    return %c0_i32, %c0_i32_0 : i32, i32
  }
  func.func @transform_9(%arg0: i32) -> (i32, i32) {
    %c0_i32 = arith.constant 0 : i32
    %c0_i32_0 = arith.constant 0 : i32
    %c0_i32_1 = arith.constant 0 : i32
    return %c0_i32, %c0_i32_0 : i32, i32
  }
  func.func @transform_10(%arg0: i32) -> (i32, i32, i32) {
    %c0_i32 = arith.constant 0 : i32
    %c0_i32_0 = arith.constant 0 : i32
    %c0_i32_1 = arith.constant 0 : i32
    %c0_i32_2 = arith.constant 0 : i32
    return %c0_i32, %c0_i32_0, %c0_i32_1 : i32, i32, i32
  }
  func.func @transform_11(%arg0: i32) -> (i32, i32) {
    %c0_i32 = arith.constant 0 : i32
    %c0_i32_0 = arith.constant 0 : i32
    %c0_i32_1 = arith.constant 0 : i32
    return %c0_i32, %c0_i32_0 : i32, i32
  }
  func.func @transform_12(%arg0: i32) -> (i32, i32) {
    %c0_i32 = arith.constant 0 : i32
    %c0_i32_0 = arith.constant 0 : i32
    %c0_i32_1 = arith.constant 0 : i32
    return %c0_i32, %c0_i32_0 : i32, i32
  }
  func.func @transform_13(%arg0: i32) -> (i32, i32) {
    %c0_i32 = arith.constant 0 : i32
    %c0_i32_0 = arith.constant 0 : i32
    %c0_i32_1 = arith.constant 0 : i32
    return %c0_i32, %c0_i32_0 : i32, i32
  }
  func.func @transform_14(%arg0: i32) -> (i32, i32) {
    %c0_i32 = arith.constant 0 : i32
    %c0_i32_0 = arith.constant 0 : i32
    %c0_i32_1 = arith.constant 0 : i32
    return %c0_i32, %c0_i32_0 : i32, i32
  }
  func.func @transform_15(%arg0: i32) -> (i32, i32) {
    %c0_i32 = arith.constant 0 : i32
    %c0_i32_0 = arith.constant 0 : i32
    %c0_i32_1 = arith.constant 0 : i32
    return %c0_i32, %c0_i32_0 : i32, i32
  }
  func.func @transform_16(%arg0: i32) -> (i32, i32) {
    %c0_i32 = arith.constant 0 : i32
    %c0_i32_0 = arith.constant 0 : i32
    %c0_i32_1 = arith.constant 0 : i32
    return %c0_i32, %c0_i32_0 : i32, i32
  }
  func.func @transform_17(%arg0: i32) -> (i32, i32) {
    %c0_i32 = arith.constant 0 : i32
    %c0_i32_0 = arith.constant 0 : i32
    %c0_i32_1 = arith.constant 0 : i32
    return %c0_i32, %c0_i32_0 : i32, i32
  }
  func.func @transform_18(%arg0: i32) -> (i32, i32) {
    %c0_i32 = arith.constant 0 : i32
    %c0_i32_0 = arith.constant 0 : i32
    %c0_i32_1 = arith.constant 0 : i32
    return %c0_i32, %c0_i32_0 : i32, i32
  }
  func.func @transform_19(%arg0: i32) -> (i32, i32) {
    %c0_i32 = arith.constant 0 : i32
    %c0_i32_0 = arith.constant 0 : i32
    %c0_i32_1 = arith.constant 0 : i32
    return %c0_i32, %c0_i32_0 : i32, i32
  }
  func.func @transform_20(%arg0: i32) -> (i32, i32, i32) {
    %c0_i32 = arith.constant 0 : i32
    %c0_i32_0 = arith.constant 0 : i32
    %c0_i32_1 = arith.constant 0 : i32
    return %arg0, %c0_i32, %c0_i32_0 : i32, i32, i32
  }
}

</mosaic_0001>

<llo_original>
// kernel: tpu_custom_call.1
$region0: #{tpu_custom_call.1}
  #allocation0 [shape = 'u32[]', space=smem, size = 0x4, offset = 0x4, fixed_abs, tag = 'smem constant byte address 0x4 - core index']
  #allocation1 [shape = 'u32[144,128]{1,0:T(1,128)}', space=vmem, size = 0x12000, scoped, tag = 'internal scratch']
  %s0 = inlined_call_operand.hbm [shape: bf16[2,8,8], index: 0, kind: input, shape index: {}]
  %s1 = inlined_call_operand.hbm [shape: bf16[2,8,8], index: 1, kind: input, shape index: {}]
  %s2 = inlined_call_operand.hbm [shape: bf16[2,8,8], index: 2, kind: input, shape index: {}]
  %s3 = inlined_call_operand.vmem [shape: bf16[8,128], index: 3, kind: input, shape index: {}]
  %s4 = inlined_call_operand.vmem [shape: f32[1,128], index: 4, kind: input, shape index: {}]
  %s5 = inlined_call_operand.vmem [shape: bf16[8,128], index: 5, kind: input, shape index: {}]
  %s6 = inlined_call_operand.hbm [shape: bf16[128,128], index: 6, kind: input, shape index: {}]
  %s7 = inlined_call_operand.hbm [shape: f32[1,128], index: 7, kind: input, shape index: {}]
  %s8 = inlined_call_operand.hbm [shape: bf16[128,128], index: 8, kind: input, shape index: {}]
  %s9 = inlined_call_operand.vmem [shape: f32[1,128], index: 9, kind: input, shape index: {}]
  %s10 = inlined_call_operand.vmem [shape: f32[3,1,32], index: 10, kind: input, shape index: {}]
  %s11 = inlined_call_operand.hbm [shape: bf16[128,128], index: 11, kind: input, shape index: {}]
  %s12 = inlined_call_operand.vmem [shape: f32[1,128], index: 12, kind: input, shape index: {}]
  %s13 = inlined_call_operand.hbm [shape: bf16[128,128], index: 13, kind: input, shape index: {}]
  %s14 = inlined_call_operand.vmem [shape: f32[1,128], index: 14, kind: input, shape index: {}]
  %s15 = inlined_call_operand.hbm [shape: bf16[128,128], index: 15, kind: input, shape index: {}]
  %s16 = inlined_call_operand.hbm [shape: bf16[128,128], index: 16, kind: input, shape index: {}]
  %s17 = inlined_call_operand.vmem [shape: f32[1,128], index: 17, kind: input, shape index: {}]
  %s18 = inlined_call_operand.hbm [shape: bf16[128,128], index: 18, kind: input, shape index: {}]
  %s19 = inlined_call_operand.vmem [shape: f32[1,128], index: 19, kind: input, shape index: {}]
  %s20 = inlined_call_operand.hbm [shape: f32[2,8,128], index: 20, kind: output, shape index: {}]
  %s21 = sld [smem:[#allocation0]]
  $region157: #{tpu_custom_call.1} parent=0
    _
  %s23 = ssub.s32 1, %s21
  %s24 = scalar_select 0, %s23, %s21
  $region1: #{tpu_custom_call.1} parent=0
    #allocation2 [shape = 'u8[4096]{0}', space=vmem, size = 0x1000, scoped, tag = 'input window, operand 0']
    #allocation3 [shape = 's32[2]{0}', space=sflag, size = 0x8, scoped, tag = 'scoped memory for tpu_custom_call.1']
    #allocation4 [shape = 's32[2]{0}', space=sflag, size = 0x8, scoped, tag = 'scoped memory for tpu_custom_call.1']
    #allocation5 [shape = 'u8[4096]{0}', space=vmem, size = 0x1000, scoped, tag = 'input window, operand 1']
    #allocation6 [shape = 's32[2]{0}', space=sflag, size = 0x8, scoped, tag = 'scoped memory for tpu_custom_call.1']
    #allocation7 [shape = 'u8[4096]{0}', space=vmem, size = 0x1000, scoped, tag = 'input window, operand 2']
    #allocation8 [shape = 'u8[32768]{0}', space=vmem, size = 0x8000, scoped, tag = 'input window, operand 6, single buffered']
    #allocation9 [shape = 's32[1]{0}', space=sflag, size = 0x4, scoped, tag = 'scoped memory for tpu_custom_call.1']
    #allocation10 [shape = 'u8[512]{0}', space=vmem, size = 0x400, scoped, tag = 'input window, operand 7, single buffered']
    #allocation11 [shape = 'u8[32768]{0}', space=vmem, size = 0x8000, scoped, tag = 'input window, operand 8, single buffered']
    #allocation12 [shape = 's32[1]{0}', space=sflag, size = 0x4, scoped, tag = 'scoped memory for tpu_custom_call.1']
    #allocation13 [shape = 'u8[32768]{0}', space=vmem, size = 0x8000, scoped, tag = 'input window, operand 11, single buffered']
    #allocation14 [shape = 'u8[32768]{0}', space=vmem, size = 0x8000, scoped, tag = 'input window, operand 13, single buffered']
    #allocation15 [shape = 's32[1]{0}', space=sflag, size = 0x4, scoped, tag = 'scoped memory for tpu_custom_call.1']
    #allocation16 [shape = 'u8[32768]{0}', space=vmem, size = 0x8000, scoped, tag = 'input window, operand 15, single buffered']
    #allocation17 [shape = 'u8[32768]{0}', space=vmem, size = 0x8000, scoped, tag = 'input window, operand 16, single buffered']
    #allocation18 [shape = 's32[1]{0}', space=sflag, size = 0x4, scoped, tag = 'scoped memory for tpu_custom_call.1']
    #allocation19 [shape = 'u8[32768]{0}', space=vmem, size = 0x8000, scoped, tag = 'input window, operand 18, single buffered']
    #allocation20 [shape = 'u8[8192]{0}', space=vmem, size = 0x2000, scoped, tag = 'output window, operand 0']
    %25 = vsyncpa [#allocation3], 0
    %s26 = scalar_lea.sflag [#allocation3], 1
    %27 = vsyncpa %s26, 0
    %28 = vsyncpa [#allocation6], 0
    %s29 = scalar_lea.sflag [#allocation6], 1
    %30 = vsyncpa %s29, 0
    %31 = vsyncpa [#allocation9], 0
    %32 = vsyncpa [#allocation12], 0
    %33 = vsyncpa [#allocation15], 0
    %34 = vsyncpa [#allocation18], 0
    %35 = vsyncpa [#allocation4], 0
    %s36 = scalar_lea.sflag [#allocation4], 1
    %37 = vsyncpa %s36, 0
    loop: start=0, step=1, limit=4
    $region2: #{tpu_custom_call.1} parent=1 // loop_pre_header
      _
    $region3: #{tpu_custom_call.1} parent=1 // loop_header
      %s39 = sphi 0, %s43
      %p40 = scmp.ge.s32.totalorder %s39, 4
      %s49 = sphi 0, %s51
      %s52 = sphi 0, %s49
      %s53 = sphi 0, %s52
      %s69 = sphi 0, %s53
      %s75 = sphi 0, %s77
      %s78 = sphi 0, %s75
      %s79 = sphi 0, %s78
      %s95 = sphi 0, %s79
      %s101 = sphi 0, %s103
      %s104 = sphi 0, %s101
      %s105 = sphi 0, %s104
      %s121 = sphi 0, %s105
      %s125 = sphi 0, %s125
      %s127 = sphi 0, %s125
      %s128 = sphi 0, %s127
      %s142 = sphi 0, %s128
      %s146 = sphi 0, %s146
      %s148 = sphi 0, %s146
      %s149 = sphi 0, %s148
      %s163 = sphi 0, %s149
      %s167 = sphi 0, %s167
      %s169 = sphi 0, %s167
      %s170 = sphi 0, %s169
      %s184 = sphi 0, %s170
      %s188 = sphi 0, %s188
      %s190 = sphi 0, %s188
      %s191 = sphi 0, %s190
      %s205 = sphi 0, %s191
      %s209 = sphi 0, %s209
      %s211 = sphi 0, %s209
      %s212 = sphi 0, %s211
      %s226 = sphi 0, %s212
      %s230 = sphi 0, %s230
      %s232 = sphi 0, %s230
      %s233 = sphi 0, %s232
      %s247 = sphi 0, %s233
      %s251 = sphi 0, %s251
      %s253 = sphi 0, %s251
      %s254 = sphi 0, %s253
      %s268 = sphi 0, %s254
      %s272 = sphi 0, %s272
      %s274 = sphi 0, %s272
      %s275 = sphi 0, %s274
      %s289 = sphi 0, %s275
      %s293 = sphi 0, %s293
      %s295 = sphi 0, %s293
      %s296 = sphi 0, %s295
      %s310 = sphi 0, %s296
      %s314 = sphi 0, %s314
      %s316 = sphi 0, %s314
      %s317 = sphi 0, %s316
      %s331 = sphi 0, %s317
      %s335 = sphi 0, %s335
      %s337 = sphi 0, %s335
      %s338 = sphi 0, %s337
      %s352 = sphi 0, %s338
      %s356 = sphi 0, %s356
      %s358 = sphi 0, %s356
      %s359 = sphi 0, %s358
      %s373 = sphi 0, %s359
      %s377 = sphi 0, %s377
      %s379 = sphi 0, %s377
      %s380 = sphi 0, %s379
      %s394 = sphi 0, %s380
      %s398 = sphi 0, %s398
      %s400 = sphi 0, %s398
      %s401 = sphi 0, %s400
      %s415 = sphi 0, %s401
      %s419 = sphi 0, %s419
      %s421 = sphi 0, %s419
      %s422 = sphi 0, %s421
      %s436 = sphi 0, %s422
      %s440 = sphi 0, %s440
      %s442 = sphi 0, %s440
      %s443 = sphi 0, %s442
      %s457 = sphi 0, %s443
      %s461 = sphi 0, %s461
      %s463 = sphi 0, %s461
      %s464 = sphi 0, %s463
      %s478 = sphi 0, %s464
      %s484 = sphi 0, %s486
      %s487 = sphi 0, %s484
      %s488 = sphi 0, %s487
      %s504 = sphi 0, %s488
    $region4: #{tpu_custom_call.1} parent=1 // loop_header_branch
      %42 = sbr.rel (%p40) target = $region8
    $region5: #{tpu_custom_call.1} parent=1 // loop_body
      %s44 = ssub.s32 %s39, 1
      %s45 = ssub.s32 %s39, 2
      %s46 = sadd.s32 %s39, 1
      %s47 = ssub.s32 %s39, %s46
      %p48 = scmp.eq.s32.totalorder %s47, 0
      %s50 = sadd.s32 %s49, 1
      %s51 = scalar_select %p48, %s49, %s50
      %p54 = pneg %p48
      %p55 = scmp.eq.s32.totalorder %s39, 1
      %p56 = por %p54, %p55
      %p57 = scmp.ne.s32.totalorder %s49, %s52
      %p58 = scmp.eq.s32.totalorder %s39, 0
      %p59 = por %p57, %p58
      %p60 = scmp.ne.s32.totalorder %s49, %s52
      %p61 = scmp.eq.s32.totalorder %s44, 1
      %p62 = por %p60, %p61
      %p63 = scmp.ne.s32.totalorder %s52, %s53
      %p64 = scmp.eq.s32.totalorder %s44, 0
      %p65 = por %p63, %p64
      %p66 = scmp.ne.s32.totalorder %s52, %s53
      %p67 = scmp.eq.s32.totalorder %s45, 1
      %p68 = por %p66, %p67
      %p70 = scmp.ne.s32.totalorder %s53, %s69
      %p71 = scmp.eq.s32.totalorder %s45, 0
      %p72 = por %p70, %p71
      %s73 = ssub.s32 %s39, %s46
      %p74 = scmp.eq.s32.totalorder %s73, 0
      %s76 = sadd.s32 %s75, 1
      %s77 = scalar_select %p74, %s75, %s76
      %p80 = pneg %p74
      %p81 = scmp.eq.s32.totalorder %s39, 1
      %p82 = por %p80, %p81
      %p83 = scmp.ne.s32.totalorder %s75, %s78
      %p84 = scmp.eq.s32.totalorder %s39, 0
      %p85 = por %p83, %p84
      %p86 = scmp.ne.s32.totalorder %s75, %s78
      %p87 = scmp.eq.s32.totalorder %s44, 1
      %p88 = por %p86, %p87
      %p89 = scmp.ne.s32.totalorder %s78, %s79
      %p90 = scmp.eq.s32.totalorder %s44, 0
      %p91 = por %p89, %p90
      %p92 = scmp.ne.s32.totalorder %s78, %s79
      %p93 = scmp.eq.s32.totalorder %s45, 1
      %p94 = por %p92, %p93
      %p96 = scmp.ne.s32.totalorder %s79, %s95
      %p97 = scmp.eq.s32.totalorder %s45, 0
      %p98 = por %p96, %p97
      %s99 = ssub.s32 %s39, %s46
      %p100 = scmp.eq.s32.totalorder %s99, 0
      %s102 = sadd.s32 %s101, 1
      %s103 = scalar_select %p100, %s101, %s102
      %p106 = pneg %p100
      %p107 = scmp.eq.s32.totalorder %s39, 1
      %p108 = por %p106, %p107
      %p109 = scmp.ne.s32.totalorder %s101, %s104
      %p110 = scmp.eq.s32.totalorder %s39, 0
      %p111 = por %p109, %p110
      %p112 = scmp.ne.s32.totalorder %s101, %s104
      %p113 = scmp.eq.s32.totalorder %s44, 1
      %p114 = por %p112, %p113
      %p115 = scmp.ne.s32.totalorder %s104, %s105
      %p116 = scmp.eq.s32.totalorder %s44, 0
      %p117 = por %p115, %p116
      %p118 = scmp.ne.s32.totalorder %s104, %s105
      %p119 = scmp.eq.s32.totalorder %s45, 1
      %p120 = por %p118, %p119
      %p122 = scmp.ne.s32.totalorder %s105, %s121
      %p123 = scmp.eq.s32.totalorder %s45, 0
      %p124 = por %p122, %p123
      %s126 = sadd.s32 %s125, 1
      %p129 = scmp.eq.s32.totalorder %s39, 1
      %p130 = scmp.ne.s32.totalorder %s125, %s127
      %p131 = scmp.eq.s32.totalorder %s39, 0
      %p132 = por %p130, %p131
      %p133 = scmp.ne.s32.totalorder %s125, %s127
      %p134 = scmp.eq.s32.totalorder %s44, 1
      %p135 = por %p133, %p134
      %p136 = scmp.ne.s32.totalorder %s127, %s128
      %p137 = scmp.eq.s32.totalorder %s44, 0
      %p138 = por %p136, %p137
      %p139 = scmp.ne.s32.totalorder %s127, %s128
      %p140 = scmp.eq.s32.totalorder %s45, 1
      %p141 = por %p139, %p140
      %p143 = scmp.ne.s32.totalorder %s128, %s142
      %p144 = scmp.eq.s32.totalorder %s45, 0
      %p145 = por %p143, %p144
      %s147 = sadd.s32 %s146, 1
      %p150 = scmp.eq.s32.totalorder %s39, 1
      %p151 = scmp.ne.s32.totalorder %s146, %s148
      %p152 = scmp.eq.s32.totalorder %s39, 0
      %p153 = por %p151, %p152
      %p154 = scmp.ne.s32.totalorder %s146, %s148
      %p155 = scmp.eq.s32.totalorder %s44, 1
      %p156 = por %p154, %p155
      %p157 = scmp.ne.s32.totalorder %s148, %s149
      %p158 = scmp.eq.s32.totalorder %s44, 0
      %p159 = por %p157, %p158
      %p160 = scmp.ne.s32.totalorder %s148, %s149
      %p161 = scmp.eq.s32.totalorder %s45, 1
      %p162 = por %p160, %p161
      %p164 = scmp.ne.s32.totalorder %s149, %s163
      %p165 = scmp.eq.s32.totalorder %s45, 0
      %p166 = por %p164, %p165
      %s168 = sadd.s32 %s167, 1
      %p171 = scmp.eq.s32.totalorder %s39, 1
      %p172 = scmp.ne.s32.totalorder %s167, %s169
      %p173 = scmp.eq.s32.totalorder %s39, 0
      %p174 = por %p172, %p173
      %p175 = scmp.ne.s32.totalorder %s167, %s169
      %p176 = scmp.eq.s32.totalorder %s44, 1
      %p177 = por %p175, %p176
      %p178 = scmp.ne.s32.totalorder %s169, %s170
      %p179 = scmp.eq.s32.totalorder %s44, 0
      %p180 = por %p178, %p179
      %p181 = scmp.ne.s32.totalorder %s169, %s170
      %p182 = scmp.eq.s32.totalorder %s45, 1
      %p183 = por %p181, %p182
      %p185 = scmp.ne.s32.totalorder %s170, %s184
      %p186 = scmp.eq.s32.totalorder %s45, 0
      %p187 = por %p185, %p186
      %s189 = sadd.s32 %s188, 1
      %p192 = scmp.eq.s32.totalorder %s39, 1
      %p193 = scmp.ne.s32.totalorder %s188, %s190
      %p194 = scmp.eq.s32.totalorder %s39, 0
      %p195 = por %p193, %p194
      %p196 = scmp.ne.s32.totalorder %s188, %s190
      %p197 = scmp.eq.s32.totalorder %s44, 1
      %p198 = por %p196, %p197
      %p199 = scmp.ne.s32.totalorder %s190, %s191
      %p200 = scmp.eq.s32.totalorder %s44, 0
      %p201 = por %p199, %p200
      %p202 = scmp.ne.s32.totalorder %s190, %s191
      %p203 = scmp.eq.s32.totalorder %s45, 1
      %p204 = por %p202, %p203
      %p206 = scmp.ne.s32.totalorder %s191, %s205
      %p207 = scmp.eq.s32.totalorder %s45, 0
      %p208 = por %p206, %p207
      %s210 = sadd.s32 %s209, 1
      %p213 = scmp.eq.s32.totalorder %s39, 1
      %p214 = scmp.ne.s32.totalorder %s209, %s211
      %p215 = scmp.eq.s32.totalorder %s39, 0
      %p216 = por %p214, %p215
      %p217 = scmp.ne.s32.totalorder %s209, %s211
      %p218 = scmp.eq.s32.totalorder %s44, 1
      %p219 = por %p217, %p218
      %p220 = scmp.ne.s32.totalorder %s211, %s212
      %p221 = scmp.eq.s32.totalorder %s44, 0
      %p222 = por %p220, %p221
      %p223 = scmp.ne.s32.totalorder %s211, %s212
      %p224 = scmp.eq.s32.totalorder %s45, 1
      %p225 = por %p223, %p224
      %p227 = scmp.ne.s32.totalorder %s212, %s226
      %p228 = scmp.eq.s32.totalorder %s45, 0
      %p229 = por %p227, %p228
      %s231 = sadd.s32 %s230, 1
      %p234 = scmp.eq.s32.totalorder %s39, 1
      %p235 = scmp.ne.s32.totalorder %s230, %s232
      %p236 = scmp.eq.s32.totalorder %s39, 0
      %p237 = por %p235, %p236
      %p238 = scmp.ne.s32.totalorder %s230, %s232
      %p239 = scmp.eq.s32.totalorder %s44, 1
      %p240 = por %p238, %p239
      %p241 = scmp.ne.s32.totalorder %s232, %s233
      %p242 = scmp.eq.s32.totalorder %s44, 0
      %p243 = por %p241, %p242
      %p244 = scmp.ne.s32.totalorder %s232, %s233
      %p245 = scmp.eq.s32.totalorder %s45, 1
      %p246 = por %p244, %p245
      %p248 = scmp.ne.s32.totalorder %s233, %s247
      %p249 = scmp.eq.s32.totalorder %s45, 0
      %p250 = por %p248, %p249
      %s252 = sadd.s32 %s251, 1
      %p255 = scmp.eq.s32.totalorder %s39, 1
      %p256 = scmp.ne.s32.totalorder %s251, %s253
      %p257 = scmp.eq.s32.totalorder %s39, 0
      %p258 = por %p256, %p257
      %p259 = scmp.ne.s32.totalorder %s251, %s253
      %p260 = scmp.eq.s32.totalorder %s44, 1
      %p261 = por %p259, %p260
      %p262 = scmp.ne.s32.totalorder %s253, %s254
      %p263 = scmp.eq.s32.totalorder %s44, 0
      %p264 = por %p262, %p263
      %p265 = scmp.ne.s32.totalorder %s253, %s254
      %p266 = scmp.eq.s32.totalorder %s45, 1
      %p267 = por %p265, %p266
      %p269 = scmp.ne.s32.totalorder %s254, %s268
      %p270 = scmp.eq.s32.totalorder %s45, 0
      %p271 = por %p269, %p270
      %s273 = sadd.s32 %s272, 1
      %p276 = scmp.eq.s32.totalorder %s39, 1
      %p277 = scmp.ne.s32.totalorder %s272, %s274
      %p278 = scmp.eq.s32.totalorder %s39, 0
      %p279 = por %p277, %p278
      %p280 = scmp.ne.s32.totalorder %s272, %s274
      %p281 = scmp.eq.s32.totalorder %s44, 1
      %p282 = por %p280, %p281
      %p283 = scmp.ne.s32.totalorder %s274, %s275
      %p284 = scmp.eq.s32.totalorder %s44, 0
      %p285 = por %p283, %p284
      %p286 = scmp.ne.s32.totalorder %s274, %s275
      %p287 = scmp.eq.s32.totalorder %s45, 1
      %p288 = por %p286, %p287
      %p290 = scmp.ne.s32.totalorder %s275, %s289
      %p291 = scmp.eq.s32.totalorder %s45, 0
      %p292 = por %p290, %p291
      %s294 = sadd.s32 %s293, 1
      %p297 = scmp.eq.s32.totalorder %s39, 1
      %p298 = scmp.ne.s32.totalorder %s293, %s295
      %p299 = scmp.eq.s32.totalorder %s39, 0
      %p300 = por %p298, %p299
      %p301 = scmp.ne.s32.totalorder %s293, %s295
      %p302 = scmp.eq.s32.totalorder %s44, 1
      %p303 = por %p301, %p302
      %p304 = scmp.ne.s32.totalorder %s295, %s296
      %p305 = scmp.eq.s32.totalorder %s44, 0
      %p306 = por %p304, %p305
      %p307 = scmp.ne.s32.totalorder %s295, %s296
      %p308 = scmp.eq.s32.totalorder %s45, 1
      %p309 = por %p307, %p308
      %p311 = scmp.ne.s32.totalorder %s296, %s310
      %p312 = scmp.eq.s32.totalorder %s45, 0
      %p313 = por %p311, %p312
      %s315 = sadd.s32 %s314, 1
      %p318 = scmp.eq.s32.totalorder %s39, 1
      %p319 = scmp.ne.s32.totalorder %s314, %s316
      %p320 = scmp.eq.s32.totalorder %s39, 0
      %p321 = por %p319, %p320
      %p322 = scmp.ne.s32.totalorder %s314, %s316
      %p323 = scmp.eq.s32.totalorder %s44, 1
      %p324 = por %p322, %p323
      %p325 = scmp.ne.s32.totalorder %s316, %s317
      %p326 = scmp.eq.s32.totalorder %s44, 0
      %p327 = por %p325, %p326
      %p328 = scmp.ne.s32.totalorder %s316, %s317
      %p329 = scmp.eq.s32.totalorder %s45, 1
      %p330 = por %p328, %p329
      %p332 = scmp.ne.s32.totalorder %s317, %s331
      %p333 = scmp.eq.s32.totalorder %s45, 0
      %p334 = por %p332, %p333
      %s336 = sadd.s32 %s335, 1
      %p339 = scmp.eq.s32.totalorder %s39, 1
      %p340 = scmp.ne.s32.totalorder %s335, %s337
      %p341 = scmp.eq.s32.totalorder %s39, 0
      %p342 = por %p340, %p341
      %p343 = scmp.ne.s32.totalorder %s335, %s337
      %p344 = scmp.eq.s32.totalorder %s44, 1
      %p345 = por %p343, %p344
      %p346 = scmp.ne.s32.totalorder %s337, %s338
      %p347 = scmp.eq.s32.totalorder %s44, 0
      %p348 = por %p346, %p347
      %p349 = scmp.ne.s32.totalorder %s337, %s338
      %p350 = scmp.eq.s32.totalorder %s45, 1
      %p351 = por %p349, %p350
      %p353 = scmp.ne.s32.totalorder %s338, %s352
      %p354 = scmp.eq.s32.totalorder %s45, 0
      %p355 = por %p353, %p354
      %s357 = sadd.s32 %s356, 1
      %p360 = scmp.eq.s32.totalorder %s39, 1
      %p361 = scmp.ne.s32.totalorder %s356, %s358
      %p362 = scmp.eq.s32.totalorder %s39, 0
      %p363 = por %p361, %p362
      %p364 = scmp.ne.s32.totalorder %s356, %s358
      %p365 = scmp.eq.s32.totalorder %s44, 1
      %p366 = por %p364, %p365
      %p367 = scmp.ne.s32.totalorder %s358, %s359
      %p368 = scmp.eq.s32.totalorder %s44, 0
      %p369 = por %p367, %p368
      %p370 = scmp.ne.s32.totalorder %s358, %s359
      %p371 = scmp.eq.s32.totalorder %s45, 1
      %p372 = por %p370, %p371
      %p374 = scmp.ne.s32.totalorder %s359, %s373
      %p375 = scmp.eq.s32.totalorder %s45, 0
      %p376 = por %p374, %p375
      %s378 = sadd.s32 %s377, 1
      %p381 = scmp.eq.s32.totalorder %s39, 1
      %p382 = scmp.ne.s32.totalorder %s377, %s379
      %p383 = scmp.eq.s32.totalorder %s39, 0
      %p384 = por %p382, %p383
      %p385 = scmp.ne.s32.totalorder %s377, %s379
      %p386 = scmp.eq.s32.totalorder %s44, 1
      %p387 = por %p385, %p386
      %p388 = scmp.ne.s32.totalorder %s379, %s380
      %p389 = scmp.eq.s32.totalorder %s44, 0
      %p390 = por %p388, %p389
      %p391 = scmp.ne.s32.totalorder %s379, %s380
      %p392 = scmp.eq.s32.totalorder %s45, 1
      %p393 = por %p391, %p392
      %p395 = scmp.ne.s32.totalorder %s380, %s394
      %p396 = scmp.eq.s32.totalorder %s45, 0
      %p397 = por %p395, %p396
      %s399 = sadd.s32 %s398, 1
      %p402 = scmp.eq.s32.totalorder %s39, 1
      %p403 = scmp.ne.s32.totalorder %s398, %s400
      %p404 = scmp.eq.s32.totalorder %s39, 0
      %p405 = por %p403, %p404
      %p406 = scmp.ne.s32.totalorder %s398, %s400
      %p407 = scmp.eq.s32.totalorder %s44, 1
      %p408 = por %p406, %p407
      %p409 = scmp.ne.s32.totalorder %s400, %s401
      %p410 = scmp.eq.s32.totalorder %s44, 0
      %p411 = por %p409, %p410
      %p412 = scmp.ne.s32.totalorder %s400, %s401
      %p413 = scmp.eq.s32.totalorder %s45, 1
      %p414 = por %p412, %p413
      %p416 = scmp.ne.s32.totalorder %s401, %s415
      %p417 = scmp.eq.s32.totalorder %s45, 0
      %p418 = por %p416, %p417
      %s420 = sadd.s32 %s419, 1
      %p423 = scmp.eq.s32.totalorder %s39, 1
      %p424 = scmp.ne.s32.totalorder %s419, %s421
      %p425 = scmp.eq.s32.totalorder %s39, 0
      %p426 = por %p424, %p425
      %p427 = scmp.ne.s32.totalorder %s419, %s421
      %p428 = scmp.eq.s32.totalorder %s44, 1
      %p429 = por %p427, %p428
      %p430 = scmp.ne.s32.totalorder %s421, %s422
      %p431 = scmp.eq.s32.totalorder %s44, 0
      %p432 = por %p430, %p431
      %p433 = scmp.ne.s32.totalorder %s421, %s422
      %p434 = scmp.eq.s32.totalorder %s45, 1
      %p435 = por %p433, %p434
      %p437 = scmp.ne.s32.totalorder %s422, %s436
      %p438 = scmp.eq.s32.totalorder %s45, 0
      %p439 = por %p437, %p438
      %s441 = sadd.s32 %s440, 1
      %p444 = scmp.eq.s32.totalorder %s39, 1
      %p445 = scmp.ne.s32.totalorder %s440, %s442
      %p446 = scmp.eq.s32.totalorder %s39, 0
      %p447 = por %p445, %p446
      %p448 = scmp.ne.s32.totalorder %s440, %s442
      %p449 = scmp.eq.s32.totalorder %s44, 1
      %p450 = por %p448, %p449
      %p451 = scmp.ne.s32.totalorder %s442, %s443
      %p452 = scmp.eq.s32.totalorder %s44, 0
      %p453 = por %p451, %p452
      %p454 = scmp.ne.s32.totalorder %s442, %s443
      %p455 = scmp.eq.s32.totalorder %s45, 1
      %p456 = por %p454, %p455
      %p458 = scmp.ne.s32.totalorder %s443, %s457
      %p459 = scmp.eq.s32.totalorder %s45, 0
      %p460 = por %p458, %p459
      %s462 = sadd.s32 %s461, 1
      %p465 = scmp.eq.s32.totalorder %s39, 1
      %p466 = scmp.ne.s32.totalorder %s461, %s463
      %p467 = scmp.eq.s32.totalorder %s39, 0
      %p468 = por %p466, %p467
      %p469 = scmp.ne.s32.totalorder %s461, %s463
      %p470 = scmp.eq.s32.totalorder %s44, 1
      %p471 = por %p469, %p470
      %p472 = scmp.ne.s32.totalorder %s463, %s464
      %p473 = scmp.eq.s32.totalorder %s44, 0
      %p474 = por %p472, %p473
      %p475 = scmp.ne.s32.totalorder %s463, %s464
      %p476 = scmp.eq.s32.totalorder %s45, 1
      %p477 = por %p475, %p476
      %p479 = scmp.ne.s32.totalorder %s464, %s478
      %p480 = scmp.eq.s32.totalorder %s45, 0
      %p481 = por %p479, %p480
      %s482 = ssub.s32 %s39, %s46
      %p483 = scmp.eq.s32.totalorder %s482, 0
      %s485 = sadd.s32 %s484, 1
      %s486 = scalar_select %p483, %s484, %s485
      %p489 = pneg %p483
      %p490 = scmp.eq.s32.totalorder %s39, 1
      %p491 = por %p489, %p490
      %p492 = scmp.ne.s32.totalorder %s484, %s487
      %p493 = scmp.eq.s32.totalorder %s39, 0
      %p494 = por %p492, %p493
      %p495 = scmp.ne.s32.totalorder %s484, %s487
      %p496 = scmp.eq.s32.totalorder %s44, 1
      %p497 = por %p495, %p496
      %p498 = scmp.ne.s32.totalorder %s487, %s488
      %p499 = scmp.eq.s32.totalorder %s44, 0
      %p500 = por %p498, %p499
      %p501 = scmp.ne.s32.totalorder %s487, %s488
      %p502 = scmp.eq.s32.totalorder %s45, 1
      %p503 = por %p501, %p502
      %p505 = scmp.ne.s32.totalorder %s488, %s504
      %p506 = scmp.eq.s32.totalorder %s45, 0
      %p507 = por %p505, %p506
      %p508 = scmp.le.s32.totalorder 1, %s39
      %p509 = scmp.lt.s32.totalorder %s39, 3
      %p510 = pnand %p508, %p509
      %p511 = pneg %p510
      // Predicated region
      $region9: #{tpu_custom_call.1} parent=5 // pred_check
        _
      $region10: #{tpu_custom_call.1} parent=5 // pred_check_branch
        %513 = sbr.rel (%p510) target = $region12
      $region11: #{tpu_custom_call.1} parent=5 // pred_region
        %s514 = ssub.s32 %s39, 1
        // Predicated region
        $region13: #{tpu_custom_call.1} parent=11 // pred_check
          %p515 = pneg %p138
        $region14: #{tpu_custom_call.1} parent=11 // pred_check_branch
          %517 = sbr.rel (%p515) target = $region16
        $region15: #{tpu_custom_call.1} parent=11 // pred_region
          _
        $region16: #{tpu_custom_call.1} parent=11 // pred_fallthru
          _
        // Predicated region
        $region17: #{tpu_custom_call.1} parent=11 // pred_check
          %p518 = pneg %p159
        $region18: #{tpu_custom_call.1} parent=11 // pred_check_branch
          %520 = sbr.rel (%p518) target = $region20
        $region19: #{tpu_custom_call.1} parent=11 // pred_region
          _
        $region20: #{tpu_custom_call.1} parent=11 // pred_fallthru
          _
        // Predicated region
        $region21: #{tpu_custom_call.1} parent=11 // pred_check
          %p521 = pneg %p180
        $region22: #{tpu_custom_call.1} parent=11 // pred_check_branch
          %523 = sbr.rel (%p521) target = $region24
        $region23: #{tpu_custom_call.1} parent=11 // pred_region
          _
        $region24: #{tpu_custom_call.1} parent=11 // pred_fallthru
          _
        // Predicated region
        $region25: #{tpu_custom_call.1} parent=11 // pred_check
          %p524 = pneg %p201
        $region26: #{tpu_custom_call.1} parent=11 // pred_check_branch
          %526 = sbr.rel (%p524) target = $region28
        $region27: #{tpu_custom_call.1} parent=11 // pred_region
          %s528 = ssub.s32 1024, 1024
          %529 = vsyncadd [#allocation9], %s528
          %s530 = sshll.u32 [#allocation8], 4
          %s531 = int_to_ptr.vmem [resolvable:$true] %s530
          %536 = dma.hbm_to_vmem [thread:$0]  %s6, 1024, %s531, [#allocation9], 64, 64, 4
        $region28: #{tpu_custom_call.1} parent=11 // pred_fallthru
          _
        // Predicated region
        $region29: #{tpu_custom_call.1} parent=11 // pred_check
          %p537 = pneg %p222
        $region30: #{tpu_custom_call.1} parent=11 // pred_check_branch
          %539 = sbr.rel (%p537) target = $region32
        $region31: #{tpu_custom_call.1} parent=11 // pred_region
          %s541 = ssub.s32 16, 16
          %542 = vsyncadd [#allocation9], %s541
          %s544 = sshll.u32 [#allocation10], 4
          %s545 = int_to_ptr.vmem [resolvable:$true] %s544
          %547 = dma.hbm_to_vmem [thread:$0]  %s7, 16, %s545, [#allocation9]
        $region32: #{tpu_custom_call.1} parent=11 // pred_fallthru
          _
        // Predicated region
        $region33: #{tpu_custom_call.1} parent=11 // pred_check
          %p548 = pneg %p243
        $region34: #{tpu_custom_call.1} parent=11 // pred_check_branch
          %550 = sbr.rel (%p548) target = $region36
        $region35: #{tpu_custom_call.1} parent=11 // pred_region
          %s552 = ssub.s32 1024, 1024
          %553 = vsyncadd [#allocation12], %s552
          %s554 = sshll.u32 [#allocation11], 4
          %s555 = int_to_ptr.vmem [resolvable:$true] %s554
          %560 = dma.hbm_to_vmem [thread:$0]  %s8, 1024, %s555, [#allocation12], 64, 64, 4
        $region36: #{tpu_custom_call.1} parent=11 // pred_fallthru
          _
        // Predicated region
        $region37: #{tpu_custom_call.1} parent=11 // pred_check
          %p561 = pneg %p264
        $region38: #{tpu_custom_call.1} parent=11 // pred_check_branch
          %563 = sbr.rel (%p561) target = $region40
        $region39: #{tpu_custom_call.1} parent=11 // pred_region
          _
        $region40: #{tpu_custom_call.1} parent=11 // pred_fallthru
          _
        // Predicated region
        $region41: #{tpu_custom_call.1} parent=11 // pred_check
          %p564 = pneg %p285
        $region42: #{tpu_custom_call.1} parent=11 // pred_check_branch
          %566 = sbr.rel (%p564) target = $region44
        $region43: #{tpu_custom_call.1} parent=11 // pred_region
          _
        $region44: #{tpu_custom_call.1} parent=11 // pred_fallthru
          _
        // Predicated region
        $region45: #{tpu_custom_call.1} parent=11 // pred_check
          %p567 = pneg %p306
        $region46: #{tpu_custom_call.1} parent=11 // pred_check_branch
          %569 = sbr.rel (%p567) target = $region48
        $region47: #{tpu_custom_call.1} parent=11 // pred_region
          %s571 = ssub.s32 1024, 1024
          %572 = vsyncadd [#allocation12], %s571
          %s573 = sshll.u32 [#allocation13], 4
          %s574 = int_to_ptr.vmem [resolvable:$true] %s573
          %579 = dma.hbm_to_vmem [thread:$0]  %s11, 1024, %s574, [#allocation12], 64, 64, 4
        $region48: #{tpu_custom_call.1} parent=11 // pred_fallthru
          _
        // Predicated region
        $region49: #{tpu_custom_call.1} parent=11 // pred_check
          %p580 = pneg %p327
        $region50: #{tpu_custom_call.1} parent=11 // pred_check_branch
          %582 = sbr.rel (%p580) target = $region52
        $region51: #{tpu_custom_call.1} parent=11 // pred_region
          _
        $region52: #{tpu_custom_call.1} parent=11 // pred_fallthru
          _
        // Predicated region
        $region53: #{tpu_custom_call.1} parent=11 // pred_check
          %p583 = pneg %p348
        $region54: #{tpu_custom_call.1} parent=11 // pred_check_branch
          %585 = sbr.rel (%p583) target = $region56
        $region55: #{tpu_custom_call.1} parent=11 // pred_region
          %s587 = ssub.s32 1024, 1024
          %588 = vsyncadd [#allocation15], %s587
          %s589 = sshll.u32 [#allocation14], 4
          %s590 = int_to_ptr.vmem [resolvable:$true] %s589
          %595 = dma.hbm_to_vmem [thread:$0]  %s13, 1024, %s590, [#allocation15], 64, 64, 4
        $region56: #{tpu_custom_call.1} parent=11 // pred_fallthru
          _
        // Predicated region
        $region57: #{tpu_custom_call.1} parent=11 // pred_check
          %p596 = pneg %p369
        $region58: #{tpu_custom_call.1} parent=11 // pred_check_branch
          %598 = sbr.rel (%p596) target = $region60
        $region59: #{tpu_custom_call.1} parent=11 // pred_region
          _
        $region60: #{tpu_custom_call.1} parent=11 // pred_fallthru
          _
        // Predicated region
        $region61: #{tpu_custom_call.1} parent=11 // pred_check
          %p599 = pneg %p390
        $region62: #{tpu_custom_call.1} parent=11 // pred_check_branch
          %601 = sbr.rel (%p599) target = $region64
        $region63: #{tpu_custom_call.1} parent=11 // pred_region
          %s603 = ssub.s32 1024, 1024
          %604 = vsyncadd [#allocation15], %s603
          %s605 = sshll.u32 [#allocation16], 4
          %s606 = int_to_ptr.vmem [resolvable:$true] %s605
          %611 = dma.hbm_to_vmem [thread:$0]  %s15, 1024, %s606, [#allocation15], 64, 64, 4
        $region64: #{tpu_custom_call.1} parent=11 // pred_fallthru
          _
        // Predicated region
        $region65: #{tpu_custom_call.1} parent=11 // pred_check
          %p612 = pneg %p411
        $region66: #{tpu_custom_call.1} parent=11 // pred_check_branch
          %614 = sbr.rel (%p612) target = $region68
        $region67: #{tpu_custom_call.1} parent=11 // pred_region
          %s616 = ssub.s32 1024, 1024
          %617 = vsyncadd [#allocation18], %s616
          %s618 = sshll.u32 [#allocation17], 4
          %s619 = int_to_ptr.vmem [resolvable:$true] %s618
          %624 = dma.hbm_to_vmem [thread:$0]  %s16, 1024, %s619, [#allocation18], 64, 64, 4
        $region68: #{tpu_custom_call.1} parent=11 // pred_fallthru
          _
        // Predicated region
        $region69: #{tpu_custom_call.1} parent=11 // pred_check
          %p625 = pneg %p432
        $region70: #{tpu_custom_call.1} parent=11 // pred_check_branch
          %627 = sbr.rel (%p625) target = $region72
        $region71: #{tpu_custom_call.1} parent=11 // pred_region
          _
        $region72: #{tpu_custom_call.1} parent=11 // pred_fallthru
          _
        // Predicated region
        $region73: #{tpu_custom_call.1} parent=11 // pred_check
          %p628 = pneg %p453
        $region74: #{tpu_custom_call.1} parent=11 // pred_check_branch
          %630 = sbr.rel (%p628) target = $region76
        $region75: #{tpu_custom_call.1} parent=11 // pred_region
          %s632 = ssub.s32 1024, 1024
          %633 = vsyncadd [#allocation18], %s632
          %s634 = sshll.u32 [#allocation19], 4
          %s635 = int_to_ptr.vmem [resolvable:$true] %s634
          %640 = dma.hbm_to_vmem [thread:$0]  %s18, 1024, %s635, [#allocation18], 64, 64, 4
        $region76: #{tpu_custom_call.1} parent=11 // pred_fallthru
          _
        // Predicated region
        $region77: #{tpu_custom_call.1} parent=11 // pred_check
          %p641 = pneg %p474
        $region78: #{tpu_custom_call.1} parent=11 // pred_check_branch
          %643 = sbr.rel (%p641) target = $region80
        $region79: #{tpu_custom_call.1} parent=11 // pred_region
          _
        $region80: #{tpu_custom_call.1} parent=11 // pred_fallthru
          _
      $region12: #{tpu_custom_call.1} parent=5 // pred_fallthru
        _
      %p644 = scmp.lt.s32.totalorder %s39, 2
      // Predicated region
      $region81: #{tpu_custom_call.1} parent=5 // pred_check
        %p645 = pneg %p644
      $region82: #{tpu_custom_call.1} parent=5 // pred_check_branch
        %647 = sbr.rel (%p645) target = $region84
      $region83: #{tpu_custom_call.1} parent=5 // pred_region
        // Predicated region
        $region85: #{tpu_custom_call.1} parent=83 // pred_check
          %p648 = pneg %p59
        $region86: #{tpu_custom_call.1} parent=83 // pred_check_branch
          %650 = sbr.rel (%p648) target = $region88
        $region87: #{tpu_custom_call.1} parent=83 // pred_region
          %s651 = sand.u32 %s49, 1
          %s652 = scalar_lea.sflag [#allocation3], %s651
          %s653 = sand.u32 %s49, 1
          %s654 = smul.addr %s653, 4
          %s655 = scalar_lea.vmem [#allocation2], %s654
          %s657 = ssub.s32 64, 64
          %658 = vsyncadd %s652, %s657
          %s659 = smul.addr %s39, 64
          %s660 = scalar_lea.hbm %s0, %s659
          %s662 = sshll.u32 %s655, 4
          %s663 = int_to_ptr.vmem [resolvable:$true] %s662
          %665 = dma.hbm_to_vmem [thread:$0]  %s660, 64, %s663, %s652
        $region88: #{tpu_custom_call.1} parent=83 // pred_fallthru
          _
        // Predicated region
        $region89: #{tpu_custom_call.1} parent=83 // pred_check
          %p666 = pneg %p85
        $region90: #{tpu_custom_call.1} parent=83 // pred_check_branch
          %668 = sbr.rel (%p666) target = $region92
        $region91: #{tpu_custom_call.1} parent=83 // pred_region
          %s669 = sand.u32 %s39, 1
          %s670 = scalar_lea.sflag [#allocation6], %s669
          %s671 = sand.u32 %s75, 1
          %s672 = smul.addr %s671, 4
          %s673 = scalar_lea.vmem [#allocation5], %s672
          %s675 = ssub.s32 64, 64
          %676 = vsyncadd %s670, %s675
          %s677 = smul.addr %s39, 64
          %s678 = scalar_lea.hbm %s1, %s677
          %s680 = sshll.u32 %s673, 4
          %s681 = int_to_ptr.vmem [resolvable:$true] %s680
          %683 = dma.hbm_to_vmem [thread:$0]  %s678, 64, %s681, %s670
        $region92: #{tpu_custom_call.1} parent=83 // pred_fallthru
          _
        // Predicated region
        $region93: #{tpu_custom_call.1} parent=83 // pred_check
          %p684 = pneg %p111
        $region94: #{tpu_custom_call.1} parent=83 // pred_check_branch
          %686 = sbr.rel (%p684) target = $region96
        $region95: #{tpu_custom_call.1} parent=83 // pred_region
          %s687 = sand.u32 %s39, 1
          %s688 = scalar_lea.sflag [#allocation6], %s687
          %s689 = sand.u32 %s101, 1
          %s690 = smul.addr %s689, 4
          %s691 = scalar_lea.vmem [#allocation7], %s690
          %s693 = ssub.s32 64, 64
          %694 = vsyncadd %s688, %s693
          %s695 = smul.addr %s39, 64
          %s696 = scalar_lea.hbm %s2, %s695
          %s698 = sshll.u32 %s691, 4
          %s699 = int_to_ptr.vmem [resolvable:$true] %s698
          %701 = dma.hbm_to_vmem [thread:$0]  %s696, 64, %s699, %s688
        $region96: #{tpu_custom_call.1} parent=83 // pred_fallthru
          _
      $region84: #{tpu_custom_call.1} parent=5 // pred_fallthru
        _
      %p702 = scmp.le.s32.totalorder 1, %s39
      %p703 = scmp.lt.s32.totalorder %s39, 3
      %p704 = pnand %p702, %p703
      %p705 = pneg %p704
      // Predicated region
      $region97: #{tpu_custom_call.1} parent=5 // pred_check
        _
      $region98: #{tpu_custom_call.1} parent=5 // pred_check_branch
        %707 = sbr.rel (%p704) target = $region100
      $region99: #{tpu_custom_call.1} parent=5 // pred_region
        %s708 = ssub.s32 %s39, 1
        %s709 = sand.u32 %s52, 1
        %s710 = scalar_lea.sflag [#allocation3], %s709
        %s711 = sand.u32 %s52, 1
        %s712 = smul.addr %s711, 4
        %s713 = scalar_lea.vmem [#allocation2], %s712
        // Predicated region
        $region101: #{tpu_custom_call.1} parent=99 // pred_check
          %p714 = pneg %p65
        $region102: #{tpu_custom_call.1} parent=99 // pred_check_branch
          %716 = sbr.rel (%p714) target = $region104
        $region103: #{tpu_custom_call.1} parent=99 // pred_region
          %717 = dma.done %s710, 64
        $region104: #{tpu_custom_call.1} parent=99 // pred_fallthru
          _
        %s718 = sand.u32 %s44, 1
        %s719 = scalar_lea.sflag [#allocation6], %s718
        %s720 = sand.u32 %s78, 1
        %s721 = smul.addr %s720, 4
        %s722 = scalar_lea.vmem [#allocation5], %s721
        // Predicated region
        $region105: #{tpu_custom_call.1} parent=99 // pred_check
          %p723 = pneg %p91
        $region106: #{tpu_custom_call.1} parent=99 // pred_check_branch
          %725 = sbr.rel (%p723) target = $region108
        $region107: #{tpu_custom_call.1} parent=99 // pred_region
          %726 = dma.done %s719, 64
        $region108: #{tpu_custom_call.1} parent=99 // pred_fallthru
          _
        %s727 = sand.u32 %s44, 1
        %s728 = scalar_lea.sflag [#allocation6], %s727
        %s729 = sand.u32 %s104, 1
        %s730 = smul.addr %s729, 4
        %s731 = scalar_lea.vmem [#allocation7], %s730
        // Predicated region
        $region109: #{tpu_custom_call.1} parent=99 // pred_check
          %p732 = pneg %p117
        $region110: #{tpu_custom_call.1} parent=99 // pred_check_branch
          %734 = sbr.rel (%p732) target = $region112
        $region111: #{tpu_custom_call.1} parent=99 // pred_region
          %735 = dma.done %s728, 64
        $region112: #{tpu_custom_call.1} parent=99 // pred_fallthru
          _
        // Predicated region
        $region113: #{tpu_custom_call.1} parent=99 // pred_check
          %p736 = pneg %p201
        $region114: #{tpu_custom_call.1} parent=99 // pred_check_branch
          %738 = sbr.rel (%p736) target = $region116
        $region115: #{tpu_custom_call.1} parent=99 // pred_region
          %739 = dma.done [#allocation9], 1024
        $region116: #{tpu_custom_call.1} parent=99 // pred_fallthru
          _
        // Predicated region
        $region117: #{tpu_custom_call.1} parent=99 // pred_check
          %p740 = pneg %p222
        $region118: #{tpu_custom_call.1} parent=99 // pred_check_branch
          %742 = sbr.rel (%p740) target = $region120
        $region119: #{tpu_custom_call.1} parent=99 // pred_region
          %743 = dma.done [#allocation9], 16
        $region120: #{tpu_custom_call.1} parent=99 // pred_fallthru
          _
        // Predicated region
        $region121: #{tpu_custom_call.1} parent=99 // pred_check
          %p744 = pneg %p243
        $region122: #{tpu_custom_call.1} parent=99 // pred_check_branch
          %746 = sbr.rel (%p744) target = $region124
        $region123: #{tpu_custom_call.1} parent=99 // pred_region
          %747 = dma.done [#allocation12], 1024
        $region124: #{tpu_custom_call.1} parent=99 // pred_fallthru
          _
        // Predicated region
        $region125: #{tpu_custom_call.1} parent=99 // pred_check
          %p748 = pneg %p306
        $region126: #{tpu_custom_call.1} parent=99 // pred_check_branch
          %750 = sbr.rel (%p748) target = $region128
        $region127: #{tpu_custom_call.1} parent=99 // pred_region
          %751 = dma.done [#allocation12], 1024
        $region128: #{tpu_custom_call.1} parent=99 // pred_fallthru
          _
        // Predicated region
        $region129: #{tpu_custom_call.1} parent=99 // pred_check
          %p752 = pneg %p348
        $region130: #{tpu_custom_call.1} parent=99 // pred_check_branch
          %754 = sbr.rel (%p752) target = $region132
        $region131: #{tpu_custom_call.1} parent=99 // pred_region
          %755 = dma.done [#allocation15], 1024
        $region132: #{tpu_custom_call.1} parent=99 // pred_fallthru
          _
        // Predicated region
        $region133: #{tpu_custom_call.1} parent=99 // pred_check
          %p756 = pneg %p390
        $region134: #{tpu_custom_call.1} parent=99 // pred_check_branch
          %758 = sbr.rel (%p756) target = $region136
        $region135: #{tpu_custom_call.1} parent=99 // pred_region
          %759 = dma.done [#allocation15], 1024
        $region136: #{tpu_custom_call.1} parent=99 // pred_fallthru
          _
        // Predicated region
        $region137: #{tpu_custom_call.1} parent=99 // pred_check
          %p760 = pneg %p411
        $region138: #{tpu_custom_call.1} parent=99 // pred_check_branch
          %762 = sbr.rel (%p760) target = $region140
        $region139: #{tpu_custom_call.1} parent=99 // pred_region
          %763 = dma.done [#allocation18], 1024
        $region140: #{tpu_custom_call.1} parent=99 // pred_fallthru
          _
        // Predicated region
        $region141: #{tpu_custom_call.1} parent=99 // pred_check
          %p764 = pneg %p453
        $region142: #{tpu_custom_call.1} parent=99 // pred_check_branch
          %766 = sbr.rel (%p764) target = $region144
        $region143: #{tpu_custom_call.1} parent=99 // pred_region
          %767 = dma.done [#allocation18], 1024
        $region144: #{tpu_custom_call.1} parent=99 // pred_fallthru
          _
        %s768 = sand.u32 %s52, 1
        %s769 = scalar_lea.sflag [#allocation3], %s768
        %s770 = sand.u32 %s52, 1
        %s771 = smul.addr %s770, 4
        %s772 = scalar_lea.vmem [#allocation2], %s771
        %p773 = pneg %p65
        %p774 = pneg %p62
        %s775 = sand.u32 %s44, 1
        %s776 = scalar_lea.sflag [#allocation6], %s775
        %s777 = sand.u32 %s78, 1
        %s778 = smul.addr %s777, 4
        %s779 = scalar_lea.vmem [#allocation5], %s778
        %p780 = pneg %p91
        %p781 = pneg %p88
        %s782 = sand.u32 %s44, 1
        %s783 = scalar_lea.sflag [#allocation6], %s782
        %s784 = sand.u32 %s104, 1
        %s785 = smul.addr %s784, 4
        %s786 = scalar_lea.vmem [#allocation7], %s785
        %p787 = pneg %p117
        %p788 = pneg %p114
        %p789 = pneg %p138
        %p790 = pneg %p135
        %p791 = pneg %p159
        %p792 = pneg %p156
        %p793 = pneg %p180
        %p794 = pneg %p177
        %p795 = pneg %p201
        %p796 = pneg %p198
        %p797 = pneg %p222
        %p798 = pneg %p219
        %p799 = pneg %p243
        %p800 = pneg %p240
        %p801 = pneg %p264
        %p802 = pneg %p261
        %p803 = pneg %p285
        %p804 = pneg %p282
        %p805 = pneg %p306
        %p806 = pneg %p303
        %p807 = pneg %p327
        %p808 = pneg %p324
        %p809 = pneg %p348
        %p810 = pneg %p345
        %p811 = pneg %p369
        %p812 = pneg %p366
        %p813 = pneg %p390
        %p814 = pneg %p387
        %p815 = pneg %p411
        %p816 = pneg %p408
        %p817 = pneg %p432
        %p818 = pneg %p429
        %p819 = pneg %p453
        %p820 = pneg %p450
        %p821 = pneg %p474
        %p822 = pneg %p471
        %p823 = pneg %p500
        %p824 = pneg %p497
        %s825 = sand.u32 %s487, 1
        %s826 = scalar_lea.sflag [#allocation4], %s825
        %s827 = sand.u32 %s487, 1
        %s828 = smul.addr %s827, 8
        %s829 = scalar_lea.vmem [#allocation20], %s828
        %v831 = vld [vmem:[%s713] sm:$0xf]
        %v832 = vld [vmem:[%s722] sm:$0xf]
        %vm833 = vcmask 64512
        %v835 = vsel %vm833, %v832, 0
        %vm837 = vcmask 1043456
        %v839 = vsel %vm837, %v831, 0
        %841 = vmatprep.subr.bf16.mxu0 0
        %842 = vmatpush1.bf16.msra.mxu0 0
        %843 = vmatprep.subr.bf16.mxu0 0
        %844 = vmatpush1.bf16.msra.mxu0 0
        %845 = vmatprep.subr.bf16.mxu0 0
        %846 = vmatpush1.bf16.msra.mxu0 0
        %847 = vmatprep.subr.bf16.mxu0 0
        %848 = vmatpush1.bf16.msra.mxu0 0
        %849 = vmatprep.subr.bf16.mxu0 0
        %850 = vmatpush1.bf16.msra.mxu0 0
        %851 = vmatprep.subr.bf16.mxu0 0
        %852 = vmatpush1.bf16.msra.mxu0 0
        %853 = vmatprep.subr.bf16.mxu0 0
        %854 = vmatpush1.bf16.msra.mxu0 0
        %855 = vmatprep.subr.bf16.mxu0 0
        %856 = vmatpush1.bf16.msra.mxu0 %v839
        %857 = vmatprep.subr.bf16.mxu0 0
        %858 = vmatpush2.bf16.msra.mxu0 0
        %859 = vmatprep.subr.bf16.mxu0 0
        %860 = vmatpush2.bf16.msra.mxu0 0
        %861 = vmatprep.subr.bf16.mxu0 0
        %862 = vmatpush2.bf16.msra.mxu0 0
        %863 = vmatprep.subr.bf16.mxu0 0
        %864 = vmatpush2.bf16.msra.mxu0 0
        %865 = vmatprep.subr.bf16.mxu0 0
        %866 = vmatpush2.bf16.msra.mxu0 0
        %867 = vmatprep.subr.bf16.mxu0 0
        %868 = vmatpush2.bf16.msra.mxu0 0
        %869 = vmatprep.subr.bf16.mxu0 0
        %870 = vmatpush2.bf16.msra.mxu0 0
        %871 = vmatprep.subr.bf16.mxu0 0
        %872 = vmatpush2.bf16.msra.mxu0 0
        %873 = vmatprep.mubr.bf16.mxu0 0
        %874 = vmatmul.mubr.bf16.gmra.mxu0 %v835
        %v875 = vpop.f32.mrf.mxu0
        %v876 = vadd.f32 0.0, %v875
        %v877 = vpop.f32.mrf.mxu0
        %v878 = vpop.f32.mrf.mxu0
        %v879 = vpop.f32.mrf.mxu0
        %880 = vdwg.mxu0
        %v881 = vpack.c.bf16 %v876, %v876
        %v882 = vld [vmem:[%s3] sm:$0xf]
        %v883 = vld [vmem:[%s4] sm:$0x1]
        %v885 = vlaneseq
        %v886 = vshrl.u32 %v885, 7
        %v887 = vsub.s32 0, %v886
        %v888 = vrot.slane %v883, %v887
        %v891 = vsel %vm833, %v881, 0
        %v894 = vsel %vm837, %v882, 0
        %896 = vmatprep.subr.bf16.mxu0 0
        %897 = vmatpush1.bf16.msra.mxu0 0
        %898 = vmatprep.subr.bf16.mxu0 0
        %899 = vmatpush1.bf16.msra.mxu0 0
        %900 = vmatprep.subr.bf16.mxu0 0
        %901 = vmatpush1.bf16.msra.mxu0 0
        %902 = vmatprep.subr.bf16.mxu0 0
        %903 = vmatpush1.bf16.msra.mxu0 0
        %904 = vmatprep.subr.bf16.mxu0 0
        %905 = vmatpush1.bf16.msra.mxu0 0
        %906 = vmatprep.subr.bf16.mxu0 0
        %907 = vmatpush1.bf16.msra.mxu0 0
        %908 = vmatprep.subr.bf16.mxu0 0
        %909 = vmatpush1.bf16.msra.mxu0 0
        %910 = vmatprep.subr.bf16.mxu0 0
        %911 = vmatpush1.bf16.msra.mxu0 %v894
        %912 = vmatprep.subr.bf16.mxu0 0
        %913 = vmatpush2.bf16.msra.mxu0 0
        %914 = vmatprep.subr.bf16.mxu0 0
        %915 = vmatpush2.bf16.msra.mxu0 0
        %916 = vmatprep.subr.bf16.mxu0 0
        %917 = vmatpush2.bf16.msra.mxu0 0
        %918 = vmatprep.subr.bf16.mxu0 0
        %919 = vmatpush2.bf16.msra.mxu0 0
        %920 = vmatprep.subr.bf16.mxu0 0
        %921 = vmatpush2.bf16.msra.mxu0 0
        %922 = vmatprep.subr.bf16.mxu0 0
        %923 = vmatpush2.bf16.msra.mxu0 0
        %924 = vmatprep.subr.bf16.mxu0 0
        %925 = vmatpush2.bf16.msra.mxu0 0
        %926 = vmatprep.subr.bf16.mxu0 0
        %927 = vmatpush2.bf16.msra.mxu0 0
        %928 = vmatprep.mubr.bf16.mxu0 0
        %929 = vmatmul.mubr.bf16.gmra.mxu0 %v891
        %v930 = vpop.f32.mrf.mxu0
        %v931 = vadd.f32 %v888, %v930
        %v932 = vpop.f32.mrf.mxu0
        %v933 = vpop.f32.mrf.mxu0
        %v934 = vpop.f32.mrf.mxu0
        %935 = vdwg.mxu0
        %v936 = vld [vmem:[%s5] sm:$0xf]
        %v937 = vsel %vm833, %v831, 0
        %v940 = vsel %vm837, %v936, 0
        %942 = vmatprep.subr.bf16.mxu0 0
        %943 = vmatpush1.bf16.msra.mxu0 0
        %944 = vmatprep.subr.bf16.mxu0 0
        %945 = vmatpush1.bf16.msra.mxu0 0
        %946 = vmatprep.subr.bf16.mxu0 0
        %947 = vmatpush1.bf16.msra.mxu0 0
        %948 = vmatprep.subr.bf16.mxu0 0
        %949 = vmatpush1.bf16.msra.mxu0 0
        %950 = vmatprep.subr.bf16.mxu0 0
        %951 = vmatpush1.bf16.msra.mxu0 0
        %952 = vmatprep.subr.bf16.mxu0 0
        %953 = vmatpush1.bf16.msra.mxu0 0
        %954 = vmatprep.subr.bf16.mxu0 0
        %955 = vmatpush1.bf16.msra.mxu0 0
        %956 = vmatprep.subr.bf16.mxu0 0
        %957 = vmatpush1.bf16.msra.mxu0 %v940
        %958 = vmatprep.subr.bf16.mxu0 0
        %959 = vmatpush2.bf16.msra.mxu0 0
        %960 = vmatprep.subr.bf16.mxu0 0
        %961 = vmatpush2.bf16.msra.mxu0 0
        %962 = vmatprep.subr.bf16.mxu0 0
        %963 = vmatpush2.bf16.msra.mxu0 0
        %964 = vmatprep.subr.bf16.mxu0 0
        %965 = vmatpush2.bf16.msra.mxu0 0
        %966 = vmatprep.subr.bf16.mxu0 0
        %967 = vmatpush2.bf16.msra.mxu0 0
        %968 = vmatprep.subr.bf16.mxu0 0
        %969 = vmatpush2.bf16.msra.mxu0 0
        %970 = vmatprep.subr.bf16.mxu0 0
        %971 = vmatpush2.bf16.msra.mxu0 0
        %972 = vmatprep.subr.bf16.mxu0 0
        %973 = vmatpush2.bf16.msra.mxu0 0
        %974 = vmatprep.mubr.bf16.mxu0 0
        %975 = vmatmul.mubr.bf16.gmra.mxu0 %v937
        %v976 = vpop.f32.mrf.mxu0
        %v977 = vadd.f32 0.0, %v976
        %v978 = vpop.f32.mrf.mxu0
        %v979 = vpop.f32.mrf.mxu0
        %v980 = vpop.f32.mrf.mxu0
        %981 = vdwg.mxu0
        %v982 = vadd.f32 %v931, %v977
        %v983 = vmax.f32 %v982, 0.0
        %v984 = vpack.c.bf16 %v983, %v983
        %v985 = vld [vmem:[#allocation8] sm:$0xf]
        %v986 = vld [vmem:[#allocation8 + $0x4] sm:$0xf]
        %v987 = vld [vmem:[#allocation8 + $0x8] sm:$0xf]
        %v988 = vld [vmem:[#allocation8 + $0xc] sm:$0xf]
        %v989 = vld [vmem:[#allocation8 + $0x10] sm:$0xf]
        %v990 = vld [vmem:[#allocation8 + $0x14] sm:$0xf]
        %v991 = vld [vmem:[#allocation8 + $0x18] sm:$0xf]
        %v992 = vld [vmem:[#allocation8 + $0x1c] sm:$0xf]
        %v993 = vld [vmem:[#allocation8 + $0x20] sm:$0xf]
        %v994 = vld [vmem:[#allocation8 + $0x24] sm:$0xf]
        %v995 = vld [vmem:[#allocation8 + $0x28] sm:$0xf]
        %v996 = vld [vmem:[#allocation8 + $0x2c] sm:$0xf]
        %v997 = vld [vmem:[#allocation8 + $0x30] sm:$0xf]
        %v998 = vld [vmem:[#allocation8 + $0x34] sm:$0xf]
        %v999 = vld [vmem:[#allocation8 + $0x38] sm:$0xf]
        %v1000 = vld [vmem:[#allocation8 + $0x3c] sm:$0xf]
        %v1001 = vld [vmem:[#allocation10] sm:$0x1]
        %v1003 = vlaneseq
        %v1004 = vshrl.u32 %v1003, 7
        %v1005 = vsub.s32 0, %v1004
        %v1006 = vrot.slane %v1001, %v1005
        %v1024 = vunpack.c.l.b16 %v985
        %v1025 = vunpack.c.l.b16 %v986
        %v1026 = vunpack.c.l.b16 %v987
        %v1027 = vunpack.c.l.b16 %v988
        %v1028 = vunpack.c.l.b16 %v989
        %v1029 = vunpack.c.l.b16 %v990
        %v1030 = vunpack.c.l.b16 %v991
        %v1031 = vunpack.c.l.b16 %v992
        %v1032 = vunpack.c.l.b16 %v993
        %v1033 = vunpack.c.l.b16 %v994
        %v1034 = vunpack.c.l.b16 %v995
        %v1035 = vunpack.c.l.b16 %v996
        %v1036 = vunpack.c.l.b16 %v997
        %v1037 = vunpack.c.l.b16 %v998
        %v1038 = vunpack.c.l.b16 %v999
        %v1039 = vunpack.c.l.b16 %v1000
        %v1040 = vpack.c.b16 %v1025, %v1024
        %v1041 = vpack.c.b16 %v1027, %v1026
        %v1042 = vpack.c.b16 %v1029, %v1028
        %v1043 = vpack.c.b16 %v1031, %v1030
        %v1044 = vpack.c.b16 %v1033, %v1032
        %v1045 = vpack.c.b16 %v1035, %v1034
        %v1046 = vpack.c.b16 %v1037, %v1036
        %v1047 = vpack.c.b16 %v1039, %v1038
        %1056 = vmatprep.subr.bf16.mxu0 0
        %1057 = vmatpush1.bf16.msra.mxu0 %v1047
        %1058 = vmatprep.subr.bf16.mxu0 0
        %1059 = vmatpush1.bf16.msra.mxu0 %v1046
        %1060 = vmatprep.subr.bf16.mxu0 0
        %1061 = vmatpush1.bf16.msra.mxu0 %v1045
        %1062 = vmatprep.subr.bf16.mxu0 0
        %1063 = vmatpush1.bf16.msra.mxu0 %v1044
        %1064 = vmatprep.subr.bf16.mxu0 0
        %1065 = vmatpush1.bf16.msra.mxu0 %v1043
        %1066 = vmatprep.subr.bf16.mxu0 0
        %1067 = vmatpush1.bf16.msra.mxu0 %v1042
        %1068 = vmatprep.subr.bf16.mxu0 0
        %1069 = vmatpush1.bf16.msra.mxu0 %v1041
        %1070 = vmatprep.subr.bf16.mxu0 0
        %1071 = vmatpush1.bf16.msra.mxu0 %v1040
        %1072 = vmatprep.subr.bf16.mxu0 0
        %1073 = vmatpush2.bf16.msra.mxu0 0
        %1074 = vmatprep.subr.bf16.mxu0 0
        %1075 = vmatpush2.bf16.msra.mxu0 0
        %1076 = vmatprep.subr.bf16.mxu0 0
        %1077 = vmatpush2.bf16.msra.mxu0 0
        %1078 = vmatprep.subr.bf16.mxu0 0
        %1079 = vmatpush2.bf16.msra.mxu0 0
        %1080 = vmatprep.subr.bf16.mxu0 0
        %1081 = vmatpush2.bf16.msra.mxu0 0
        %1082 = vmatprep.subr.bf16.mxu0 0
        %1083 = vmatpush2.bf16.msra.mxu0 0
        %1084 = vmatprep.subr.bf16.mxu0 0
        %1085 = vmatpush2.bf16.msra.mxu0 0
        %1086 = vmatprep.subr.bf16.mxu0 0
        %1087 = vmatpush2.bf16.msra.mxu0 0
        %1088 = vmatprep.mubr.bf16.mxu0 0
        %1089 = vmatmul.mubr.bf16.gmra.mxu0 %v984
        %v1090 = vpop.f32.mrf.mxu0
        %v1091 = vadd.f32 %v1006, %v1090
        %v1092 = vpop.f32.mrf.mxu0
        %v1093 = vpop.f32.mrf.mxu0
        %v1094 = vpop.f32.mrf.mxu0
        %1095 = vdwg.mxu0
        %v1096 = vld [vmem:[#allocation11] sm:$0xf]
        %v1097 = vld [vmem:[#allocation11 + $0x4] sm:$0xf]
        %v1098 = vld [vmem:[#allocation11 + $0x8] sm:$0xf]
        %v1099 = vld [vmem:[#allocation11 + $0xc] sm:$0xf]
        %v1100 = vld [vmem:[#allocation11 + $0x10] sm:$0xf]
        %v1101 = vld [vmem:[#allocation11 + $0x14] sm:$0xf]
        %v1102 = vld [vmem:[#allocation11 + $0x18] sm:$0xf]
        %v1103 = vld [vmem:[#allocation11 + $0x1c] sm:$0xf]
        %v1104 = vld [vmem:[#allocation11 + $0x20] sm:$0xf]
        %v1105 = vld [vmem:[#allocation11 + $0x24] sm:$0xf]
        %v1106 = vld [vmem:[#allocation11 + $0x28] sm:$0xf]
        %v1107 = vld [vmem:[#allocation11 + $0x2c] sm:$0xf]
        %v1108 = vld [vmem:[#allocation11 + $0x30] sm:$0xf]
        %v1109 = vld [vmem:[#allocation11 + $0x34] sm:$0xf]
        %v1110 = vld [vmem:[#allocation11 + $0x38] sm:$0xf]
        %v1111 = vld [vmem:[#allocation11 + $0x3c] sm:$0xf]
        %v1112 = vld [vmem:[%s9] sm:$0x1]
        %v1114 = vlaneseq
        %v1115 = vshrl.u32 %v1114, 7
        %v1116 = vsub.s32 0, %v1115
        %v1117 = vrot.slane %v1112, %v1116
        %v1135 = vunpack.c.l.b16 %v1096
        %v1136 = vunpack.c.l.b16 %v1097
        %v1137 = vunpack.c.l.b16 %v1098
        %v1138 = vunpack.c.l.b16 %v1099
        %v1139 = vunpack.c.l.b16 %v1100
        %v1140 = vunpack.c.l.b16 %v1101
        %v1141 = vunpack.c.l.b16 %v1102
        %v1142 = vunpack.c.l.b16 %v1103
        %v1143 = vunpack.c.l.b16 %v1104
        %v1144 = vunpack.c.l.b16 %v1105
        %v1145 = vunpack.c.l.b16 %v1106
        %v1146 = vunpack.c.l.b16 %v1107
        %v1147 = vunpack.c.l.b16 %v1108
        %v1148 = vunpack.c.l.b16 %v1109
        %v1149 = vunpack.c.l.b16 %v1110
        %v1150 = vunpack.c.l.b16 %v1111
        %v1151 = vpack.c.b16 %v1136, %v1135
        %v1152 = vpack.c.b16 %v1138, %v1137
        %v1153 = vpack.c.b16 %v1140, %v1139
        %v1154 = vpack.c.b16 %v1142, %v1141
        %v1155 = vpack.c.b16 %v1144, %v1143
        %v1156 = vpack.c.b16 %v1146, %v1145
        %v1157 = vpack.c.b16 %v1148, %v1147
        %v1158 = vpack.c.b16 %v1150, %v1149
        %1167 = vmatprep.subr.bf16.mxu0 0
        %1168 = vmatpush1.bf16.msra.mxu0 %v1158
        %1169 = vmatprep.subr.bf16.mxu0 0
        %1170 = vmatpush1.bf16.msra.mxu0 %v1157
        %1171 = vmatprep.subr.bf16.mxu0 0
        %1172 = vmatpush1.bf16.msra.mxu0 %v1156
        %1173 = vmatprep.subr.bf16.mxu0 0
        %1174 = vmatpush1.bf16.msra.mxu0 %v1155
        %1175 = vmatprep.subr.bf16.mxu0 0
        %1176 = vmatpush1.bf16.msra.mxu0 %v1154
        %1177 = vmatprep.subr.bf16.mxu0 0
        %1178 = vmatpush1.bf16.msra.mxu0 %v1153
        %1179 = vmatprep.subr.bf16.mxu0 0
        %1180 = vmatpush1.bf16.msra.mxu0 %v1152
        %1181 = vmatprep.subr.bf16.mxu0 0
        %1182 = vmatpush1.bf16.msra.mxu0 %v1151
        %1183 = vmatprep.subr.bf16.mxu0 0
        %1184 = vmatpush2.bf16.msra.mxu0 0
        %1185 = vmatprep.subr.bf16.mxu0 0
        %1186 = vmatpush2.bf16.msra.mxu0 0
        %1187 = vmatprep.subr.bf16.mxu0 0
        %1188 = vmatpush2.bf16.msra.mxu0 0
        %1189 = vmatprep.subr.bf16.mxu0 0
        %1190 = vmatpush2.bf16.msra.mxu0 0
        %1191 = vmatprep.subr.bf16.mxu0 0
        %1192 = vmatpush2.bf16.msra.mxu0 0
        %1193 = vmatprep.subr.bf16.mxu0 0
        %1194 = vmatpush2.bf16.msra.mxu0 0
        %1195 = vmatprep.subr.bf16.mxu0 0
        %1196 = vmatpush2.bf16.msra.mxu0 0
        %1197 = vmatprep.subr.bf16.mxu0 0
        %1198 = vmatpush2.bf16.msra.mxu0 0
        %1199 = vmatprep.mubr.bf16.mxu0 0
        %1200 = vmatmul.mubr.bf16.gmra.mxu0 %v984
        %v1201 = vpop.f32.mrf.mxu0
        %v1202 = vadd.f32 %v1117, %v1201
        %v1203 = vpop.f32.mrf.mxu0
        %v1204 = vpop.f32.mrf.mxu0
        %v1205 = vpop.f32.mrf.mxu0
        %1206 = vdwg.mxu0
        %v1207 = vld [vmem:[#allocation13] sm:$0xf]
        %v1208 = vld [vmem:[#allocation13 + $0x4] sm:$0xf]
        %v1209 = vld [vmem:[#allocation13 + $0x8] sm:$0xf]
        %v1210 = vld [vmem:[#allocation13 + $0xc] sm:$0xf]
        %v1211 = vld [vmem:[#allocation13 + $0x10] sm:$0xf]
        %v1212 = vld [vmem:[#allocation13 + $0x14] sm:$0xf]
        %v1213 = vld [vmem:[#allocation13 + $0x18] sm:$0xf]
        %v1214 = vld [vmem:[#allocation13 + $0x1c] sm:$0xf]
        %v1215 = vld [vmem:[#allocation13 + $0x20] sm:$0xf]
        %v1216 = vld [vmem:[#allocation13 + $0x24] sm:$0xf]
        %v1217 = vld [vmem:[#allocation13 + $0x28] sm:$0xf]
        %v1218 = vld [vmem:[#allocation13 + $0x2c] sm:$0xf]
        %v1219 = vld [vmem:[#allocation13 + $0x30] sm:$0xf]
        %v1220 = vld [vmem:[#allocation13 + $0x34] sm:$0xf]
        %v1221 = vld [vmem:[#allocation13 + $0x38] sm:$0xf]
        %v1222 = vld [vmem:[#allocation13 + $0x3c] sm:$0xf]
        %v1239 = vunpack.c.l.b16 %v1207
        %v1240 = vunpack.c.l.b16 %v1208
        %v1241 = vunpack.c.l.b16 %v1209
        %v1242 = vunpack.c.l.b16 %v1210
        %v1243 = vunpack.c.l.b16 %v1211
        %v1244 = vunpack.c.l.b16 %v1212
        %v1245 = vunpack.c.l.b16 %v1213
        %v1246 = vunpack.c.l.b16 %v1214
        %v1247 = vunpack.c.l.b16 %v1215
        %v1248 = vunpack.c.l.b16 %v1216
        %v1249 = vunpack.c.l.b16 %v1217
        %v1250 = vunpack.c.l.b16 %v1218
        %v1251 = vunpack.c.l.b16 %v1219
        %v1252 = vunpack.c.l.b16 %v1220
        %v1253 = vunpack.c.l.b16 %v1221
        %v1254 = vunpack.c.l.b16 %v1222
        %v1255 = vpack.c.b16 %v1240, %v1239
        %v1256 = vpack.c.b16 %v1242, %v1241
        %v1257 = vpack.c.b16 %v1244, %v1243
        %v1258 = vpack.c.b16 %v1246, %v1245
        %v1259 = vpack.c.b16 %v1248, %v1247
        %v1260 = vpack.c.b16 %v1250, %v1249
        %v1261 = vpack.c.b16 %v1252, %v1251
        %v1262 = vpack.c.b16 %v1254, %v1253
        %1271 = vmatprep.subr.bf16.mxu0 0
        %1272 = vmatpush1.bf16.msra.mxu0 %v1262
        %1273 = vmatprep.subr.bf16.mxu0 0
        %1274 = vmatpush1.bf16.msra.mxu0 %v1261
        %1275 = vmatprep.subr.bf16.mxu0 0
        %1276 = vmatpush1.bf16.msra.mxu0 %v1260
        %1277 = vmatprep.subr.bf16.mxu0 0
        %1278 = vmatpush1.bf16.msra.mxu0 %v1259
        %1279 = vmatprep.subr.bf16.mxu0 0
        %1280 = vmatpush1.bf16.msra.mxu0 %v1258
        %1281 = vmatprep.subr.bf16.mxu0 0
        %1282 = vmatpush1.bf16.msra.mxu0 %v1257
        %1283 = vmatprep.subr.bf16.mxu0 0
        %1284 = vmatpush1.bf16.msra.mxu0 %v1256
        %1285 = vmatprep.subr.bf16.mxu0 0
        %1286 = vmatpush1.bf16.msra.mxu0 %v1255
        %1287 = vmatprep.subr.bf16.mxu0 0
        %1288 = vmatpush2.bf16.msra.mxu0 0
        %1289 = vmatprep.subr.bf16.mxu0 0
        %1290 = vmatpush2.bf16.msra.mxu0 0
        %1291 = vmatprep.subr.bf16.mxu0 0
        %1292 = vmatpush2.bf16.msra.mxu0 0
        %1293 = vmatprep.subr.bf16.mxu0 0
        %1294 = vmatpush2.bf16.msra.mxu0 0
        %1295 = vmatprep.subr.bf16.mxu0 0
        %1296 = vmatpush2.bf16.msra.mxu0 0
        %1297 = vmatprep.subr.bf16.mxu0 0
        %1298 = vmatpush2.bf16.msra.mxu0 0
        %1299 = vmatprep.subr.bf16.mxu0 0
        %1300 = vmatpush2.bf16.msra.mxu0 0
        %1301 = vmatprep.subr.bf16.mxu0 0
        %1302 = vmatpush2.bf16.msra.mxu0 0
        %1303 = vmatprep.mubr.bf16.mxu0 0
        %1304 = vmatmul.mubr.bf16.gmra.mxu0 %v984
        %v1305 = vpop.f32.mrf.mxu0
        %v1306 = vadd.f32 0.0, %v1305
        %v1307 = vpop.f32.mrf.mxu0
        %v1308 = vpop.f32.mrf.mxu0
        %v1309 = vpop.f32.mrf.mxu0
        %1310 = vdwg.mxu0
        %v1311 = vlaneseq
        %v1312 = vshrl.u32 %v1311, 7
        %v1313 = vlaneseq
        %v1314 = vand.u32 %v1313, 127
        %vm1315 = vcmp.eq.s32.totalorder %v1312, %v1314
        %v1316 = vunpack.c.l.bf16 %v832
        %v1317 = vsel %vm1315, 1.0, %v1316
        %vm1318 = vcmp.gt.f32.partialorder %v1317, 0.0
        %v1319 = vld [vmem:[%s10] sm:$0x1]
        %v1321 = vcombine.high %v1202, %v1202
        %v1323 = vunpack.c.l.s4 1966171168
        %v1324 = vunpack.c.0.s8 %v1323
        %v1325 = vlaneseq
        %v1326 = vshrl.u32 %v1325, 7
        %v1327 = vsub.s32 %v1324, %v1326
        %v1328 = vrot.slane %v1202, %v1327
        %v1330 = vunpack.c.l.s4 1966171168
        %v1331 = vunpack.c.0.s8 %v1330
        %v1332 = vlaneseq
        %v1333 = vshrl.u32 %v1332, 7
        %v1334 = vsub.s32 %v1331, %v1333
        %v1335 = vrot.slane %v1321, %v1334
        %v1336 = vcombine.high %v1328, %v1328
        %v1337 = vcombine.high %v1335, %v1335
        %v1339 = vunpack.c.l.s4 1966171168
        %v1340 = vunpack.c.0.s8 %v1339
        %v1341 = vlaneseq
        %v1342 = vshrl.u32 %v1341, 7
        %v1343 = vsub.s32 %v1340, %v1342
        %v1344 = vrot.slane %v1328, %v1343
        %v1346 = vunpack.c.l.s4 1966171168
        %v1347 = vunpack.c.0.s8 %v1346
        %v1348 = vlaneseq
        %v1349 = vshrl.u32 %v1348, 7
        %v1350 = vsub.s32 %v1347, %v1349
        %v1351 = vrot.slane %v1335, %v1350
        %v1353 = vunpack.c.l.s4 1966171168
        %v1354 = vunpack.c.0.s8 %v1353
        %v1355 = vlaneseq
        %v1356 = vshrl.u32 %v1355, 7
        %v1357 = vsub.s32 %v1354, %v1356
        %v1358 = vrot.slane %v1336, %v1357
        %v1360 = vunpack.c.l.s4 1966171168
        %v1361 = vunpack.c.0.s8 %v1360
        %v1362 = vlaneseq
        %v1363 = vshrl.u32 %v1362, 7
        %v1364 = vsub.s32 %v1361, %v1363
        %v1365 = vrot.slane %v1337, %v1364
        %v1366 = vcombine.high %v1344, %v1344
        %v1367 = vcombine.high %v1351, %v1351
        %v1368 = vcombine.high %v1358, %v1358
        %v1369 = vcombine.high %v1365, %v1365
        %v1370 = vlaneseq
        %v1371 = vshrl.u32 %v1370, 7
        %v1372 = vsub.s32 0, %v1371
        %v1373 = vrot.slane %v1344, %v1372
        %v1374 = vlaneseq
        %v1375 = vshrl.u32 %v1374, 7
        %v1376 = vsub.s32 0, %v1375
        %v1377 = vrot.slane %v1358, %v1376
        %v1378 = vlaneseq
        %v1379 = vshrl.u32 %v1378, 7
        %v1380 = vsub.s32 0, %v1379
        %v1381 = vrot.slane %v1366, %v1380
        %v1382 = vlaneseq
        %v1383 = vshrl.u32 %v1382, 7
        %v1384 = vsub.s32 0, %v1383
        %v1385 = vrot.slane %v1368, %v1384
        %v1386 = vlaneseq
        %v1387 = vshrl.u32 %v1386, 7
        %v1388 = vsub.s32 0, %v1387
        %v1389 = vrot.slane %v1351, %v1388
        %v1390 = vlaneseq
        %v1391 = vshrl.u32 %v1390, 7
        %v1392 = vsub.s32 0, %v1391
        %v1393 = vrot.slane %v1365, %v1392
        %v1394 = vlaneseq
        %v1395 = vshrl.u32 %v1394, 7
        %v1396 = vsub.s32 0, %v1395
        %v1397 = vrot.slane %v1367, %v1396
        %v1398 = vlaneseq
        %v1399 = vshrl.u32 %v1398, 7
        %v1400 = vsub.s32 0, %v1399
        %v1401 = vrot.slane %v1369, %v1400
        %v1410 = vadd.f32 %v1373, %v1091
        %v1411 = vadd.f32 %v1377, %v1091
        %v1412 = vadd.f32 %v1381, %v1091
        %v1413 = vadd.f32 %v1385, %v1091
        %v1414 = vadd.f32 %v1389, %v1091
        %v1415 = vadd.f32 %v1393, %v1091
        %v1416 = vadd.f32 %v1397, %v1091
        %v1417 = vadd.f32 %v1401, %v1091
        %vm1418 = vcmp.gt.f32.partialorder %v1410, 0.0
        %vm1419 = vcmp.gt.f32.partialorder %v1411, 0.0
        %vm1420 = vcmp.gt.f32.partialorder %v1412, 0.0
        %vm1421 = vcmp.gt.f32.partialorder %v1413, 0.0
        %vm1422 = vcmp.gt.f32.partialorder %v1414, 0.0
        %vm1423 = vcmp.gt.f32.partialorder %v1415, 0.0
        %vm1424 = vcmp.gt.f32.partialorder %v1416, 0.0
        %vm1425 = vcmp.gt.f32.partialorder %v1417, 0.0
        %v1426 = vmul.f32 %v1410, 0.2
        %v1427 = vmul.f32 %v1411, 0.2
        %v1428 = vmul.f32 %v1412, 0.2
        %v1429 = vmul.f32 %v1413, 0.2
        %v1430 = vmul.f32 %v1414, 0.2
        %v1431 = vmul.f32 %v1415, 0.2
        %v1432 = vmul.f32 %v1416, 0.2
        %v1433 = vmul.f32 %v1417, 0.2
        %v1434 = vsel %vm1418, %v1410, %v1426
        %v1435 = vsel %vm1419, %v1411, %v1427
        %v1436 = vsel %vm1420, %v1412, %v1428
        %v1437 = vsel %vm1421, %v1413, %v1429
        %v1438 = vsel %vm1422, %v1414, %v1430
        %v1439 = vsel %vm1423, %v1415, %v1431
        %v1440 = vsel %vm1424, %v1416, %v1432
        %v1441 = vsel %vm1425, %v1417, %v1433
        %v1443 = vlaneseq
        %v1444 = vshrl.u32 %v1443, 7
        %v1445 = vsub.s32 0, %v1444
        %v1446 = vrot.slane %v1319, %v1445
        %v1448 = vmul.f32 %v1434, %v1446
        %v1449 = vmul.f32 %v1435, %v1446
        %v1450 = vmul.f32 %v1436, %v1446
        %v1451 = vmul.f32 %v1437, %v1446
        %v1452 = vmul.f32 %v1438, %v1446
        %v1453 = vmul.f32 %v1439, %v1446
        %v1454 = vmul.f32 %v1440, %v1446
        %v1455 = vmul.f32 %v1441, %v1446
        %vm1456 = vcmask 261120
        %v1457 = vsel %vm1456, %v1448, 0.0
        %1458 = vadd.xlane.f32.xlu0 %v1457
        %v1459 = vpop.xlane.xlu0 %1458
        %v1460 = vsel %vm1456, %v1449, 0.0
        %1461 = vadd.xlane.f32.xlu0 %v1460
        %v1462 = vpop.xlane.xlu0 %1461
        %v1463 = vsel %vm1456, %v1450, 0.0
        %1464 = vadd.xlane.f32.xlu0 %v1463
        %v1465 = vpop.xlane.xlu0 %1464
        %v1466 = vsel %vm1456, %v1451, 0.0
        %1467 = vadd.xlane.f32.xlu0 %v1466
        %v1468 = vpop.xlane.xlu0 %1467
        %v1469 = vsel %vm1456, %v1452, 0.0
        %1470 = vadd.xlane.f32.xlu0 %v1469
        %v1471 = vpop.xlane.xlu0 %1470
        %v1472 = vsel %vm1456, %v1453, 0.0
        %1473 = vadd.xlane.f32.xlu0 %v1472
        %v1474 = vpop.xlane.xlu0 %1473
        %v1475 = vsel %vm1456, %v1454, 0.0
        %1476 = vadd.xlane.f32.xlu0 %v1475
        %v1477 = vpop.xlane.xlu0 %1476
        %v1478 = vsel %vm1456, %v1455, 0.0
        %1479 = vadd.xlane.f32.xlu0 %v1478
        %v1480 = vpop.xlane.xlu0 %1479
        %v1489 = vlaneseq
        %v1490 = vshrl.u32 %v1489, 7
        %v1491 = vsub.s32 %v1314, %v1490
        %v1492 = vrot.slane %v1459, %v1491
        %v1493 = vlaneseq
        %v1494 = vshrl.u32 %v1493, 7
        %v1495 = vsub.s32 %v1314, %v1494
        %v1496 = vrot.slane %v1462, %v1495
        %v1497 = vlaneseq
        %v1498 = vshrl.u32 %v1497, 7
        %v1499 = vsub.s32 %v1314, %v1498
        %v1500 = vrot.slane %v1465, %v1499
        %v1501 = vlaneseq
        %v1502 = vshrl.u32 %v1501, 7
        %v1503 = vsub.s32 %v1314, %v1502
        %v1504 = vrot.slane %v1468, %v1503
        %v1505 = vlaneseq
        %v1506 = vshrl.u32 %v1505, 7
        %v1507 = vsub.s32 %v1314, %v1506
        %v1508 = vrot.slane %v1471, %v1507
        %v1509 = vlaneseq
        %v1510 = vshrl.u32 %v1509, 7
        %v1511 = vsub.s32 %v1314, %v1510
        %v1512 = vrot.slane %v1474, %v1511
        %v1513 = vlaneseq
        %v1514 = vshrl.u32 %v1513, 7
        %v1515 = vsub.s32 %v1314, %v1514
        %v1516 = vrot.slane %v1477, %v1515
        %v1517 = vlaneseq
        %v1518 = vshrl.u32 %v1517, 7
        %v1519 = vsub.s32 %v1314, %v1518
        %v1520 = vrot.slane %v1480, %v1519
        %vm1521 = vcmask 1041409
        %v1522 = vsel %vm1521, %v1496, %v1492
        %vm1523 = vcmask 1042434
        %v1524 = vsel %vm1523, %v1500, %v1522
        %vm1525 = vcmask 1043459
        %v1526 = vsel %vm1525, %v1504, %v1524
        %vm1527 = vcmask 1044484
        %v1528 = vsel %vm1527, %v1508, %v1526
        %vm1529 = vcmask 1045509
        %v1530 = vsel %vm1529, %v1512, %v1528
        %vm1531 = vcmask 1046534
        %v1532 = vsel %vm1531, %v1516, %v1530
        %vm1533 = vcmask 1047559
        %v1534 = vsel %vm1533, %v1520, %v1532
        %v1536 = vsel %vm1318, %v1534, -1e+30
        %v1537 = vsel %vm833, %v1536, -inf
        %1538 = vmax.xlane.f32.xlu0 %v1537
        %v1539 = vpop.xlane.xlu0 %1538
        %v1540 = vsub.f32 %v1536, %v1539
        %v1541 = vmul.f32 %v1540, 1.442695
        %v1542 = vpow.pop %v1541
        %v1543 = vmul.f32 %v1317, %v1542
        %v1544 = vsel %vm833, %v1543, 0.0
        %1545 = vadd.xlane.f32.xlu0 %v1544
        %v1546 = vpop.xlane.xlu0 %1545
        %v1547 = vmax.f32 %v1546, 1e-20
        %v1548 = vrcp.pop %v1547
        %v1549 = vmul.f32 %v1543, %v1548
        %v1550 = vpack.c.bf16 %v1549, %v1549
        %v1551 = vpack.c.bf16 %v1091, %v1091
        %v1553 = vsel %vm833, %v1550, 0
        %v1556 = vsel %vm837, %v1551, 0
        %1558 = vmatprep.subr.bf16.mxu0 0
        %1559 = vmatpush1.bf16.msra.mxu0 0
        %1560 = vmatprep.subr.bf16.mxu0 0
        %1561 = vmatpush1.bf16.msra.mxu0 0
        %1562 = vmatprep.subr.bf16.mxu0 0
        %1563 = vmatpush1.bf16.msra.mxu0 0
        %1564 = vmatprep.subr.bf16.mxu0 0
        %1565 = vmatpush1.bf16.msra.mxu0 0
        %1566 = vmatprep.subr.bf16.mxu0 0
        %1567 = vmatpush1.bf16.msra.mxu0 0
        %1568 = vmatprep.subr.bf16.mxu0 0
        %1569 = vmatpush1.bf16.msra.mxu0 0
        %1570 = vmatprep.subr.bf16.mxu0 0
        %1571 = vmatpush1.bf16.msra.mxu0 0
        %1572 = vmatprep.subr.bf16.mxu0 0
        %1573 = vmatpush1.bf16.msra.mxu0 %v1556
        %1574 = vmatprep.subr.bf16.mxu0 0
        %1575 = vmatpush2.bf16.msra.mxu0 0
        %1576 = vmatprep.subr.bf16.mxu0 0
        %1577 = vmatpush2.bf16.msra.mxu0 0
        %1578 = vmatprep.subr.bf16.mxu0 0
        %1579 = vmatpush2.bf16.msra.mxu0 0
        %1580 = vmatprep.subr.bf16.mxu0 0
        %1581 = vmatpush2.bf16.msra.mxu0 0
        %1582 = vmatprep.subr.bf16.mxu0 0
        %1583 = vmatpush2.bf16.msra.mxu0 0
        %1584 = vmatprep.subr.bf16.mxu0 0
        %1585 = vmatpush2.bf16.msra.mxu0 0
        %1586 = vmatprep.subr.bf16.mxu0 0
        %1587 = vmatpush2.bf16.msra.mxu0 0
        %1588 = vmatprep.subr.bf16.mxu0 0
        %1589 = vmatpush2.bf16.msra.mxu0 0
        %1590 = vmatprep.mubr.bf16.mxu0 0
        %1591 = vmatmul.mubr.bf16.gmra.mxu0 %v1553
        %v1592 = vpop.f32.mrf.mxu0
        %v1593 = vadd.f32 0.0, %v1592
        %v1594 = vpop.f32.mrf.mxu0
        %v1595 = vpop.f32.mrf.mxu0
        %v1596 = vpop.f32.mrf.mxu0
        %1597 = vdwg.mxu0
        %s1598 = scalar_lea.vmem %s10, 1
        %v1599 = vld [vmem:[%s1598] sm:$0x1]
        %v1601 = vlaneseq
        %v1602 = vshrl.u32 %v1601, 7
        %v1603 = vsub.s32 0, %v1602
        %v1604 = vrot.slane %v1599, %v1603
        %1605 = vrot.lane.b32.xlu0 %v1604, 32
        %v1606 = vpop.permute.xlu0 %1605
        %v1608 = vmul.f32 %v1434, %v1606
        %v1609 = vmul.f32 %v1435, %v1606
        %v1610 = vmul.f32 %v1436, %v1606
        %v1611 = vmul.f32 %v1437, %v1606
        %v1612 = vmul.f32 %v1438, %v1606
        %v1613 = vmul.f32 %v1439, %v1606
        %v1614 = vmul.f32 %v1440, %v1606
        %v1615 = vmul.f32 %v1441, %v1606
        %1624 = vrot.lane.b32.xlu0 %v1608, 96
        %v1625 = vpop.permute.xlu0 %1624
        %1626 = vrot.lane.b32.xlu0 %v1609, 96
        %v1627 = vpop.permute.xlu0 %1626
        %1628 = vrot.lane.b32.xlu0 %v1610, 96
        %v1629 = vpop.permute.xlu0 %1628
        %1630 = vrot.lane.b32.xlu0 %v1611, 96
        %v1631 = vpop.permute.xlu0 %1630
        %1632 = vrot.lane.b32.xlu0 %v1612, 96
        %v1633 = vpop.permute.xlu0 %1632
        %1634 = vrot.lane.b32.xlu0 %v1613, 96
        %v1635 = vpop.permute.xlu0 %1634
        %1636 = vrot.lane.b32.xlu0 %v1614, 96
        %v1637 = vpop.permute.xlu0 %1636
        %1638 = vrot.lane.b32.xlu0 %v1615, 96
        %v1639 = vpop.permute.xlu0 %1638
        %v1648 = vsel %vm1456, %v1625, 0.0
        %1649 = vadd.xlane.f32.xlu0 %v1648
        %v1650 = vpop.xlane.xlu0 %1649
        %v1651 = vsel %vm1456, %v1627, 0.0
        %1652 = vadd.xlane.f32.xlu0 %v1651
        %v1653 = vpop.xlane.xlu0 %1652
        %v1654 = vsel %vm1456, %v1629, 0.0
        %1655 = vadd.xlane.f32.xlu0 %v1654
        %v1656 = vpop.xlane.xlu0 %1655
        %v1657 = vsel %vm1456, %v1631, 0.0
        %1658 = vadd.xlane.f32.xlu0 %v1657
        %v1659 = vpop.xlane.xlu0 %1658
        %v1660 = vsel %vm1456, %v1633, 0.0
        %1661 = vadd.xlane.f32.xlu0 %v1660
        %v1662 = vpop.xlane.xlu0 %1661
        %v1663 = vsel %vm1456, %v1635, 0.0
        %1664 = vadd.xlane.f32.xlu0 %v1663
        %v1665 = vpop.xlane.xlu0 %1664
        %v1666 = vsel %vm1456, %v1637, 0.0
        %1667 = vadd.xlane.f32.xlu0 %v1666
        %v1668 = vpop.xlane.xlu0 %1667
        %v1669 = vsel %vm1456, %v1639, 0.0
        %1670 = vadd.xlane.f32.xlu0 %v1669
        %v1671 = vpop.xlane.xlu0 %1670
        %v1680 = vlaneseq
        %v1681 = vshrl.u32 %v1680, 7
        %v1682 = vsub.s32 %v1314, %v1681
        %v1683 = vrot.slane %v1650, %v1682
        %v1684 = vlaneseq
        %v1685 = vshrl.u32 %v1684, 7
        %v1686 = vsub.s32 %v1314, %v1685
        %v1687 = vrot.slane %v1653, %v1686
        %v1688 = vlaneseq
        %v1689 = vshrl.u32 %v1688, 7
        %v1690 = vsub.s32 %v1314, %v1689
        %v1691 = vrot.slane %v1656, %v1690
        %v1692 = vlaneseq
        %v1693 = vshrl.u32 %v1692, 7
        %v1694 = vsub.s32 %v1314, %v1693
        %v1695 = vrot.slane %v1659, %v1694
        %v1696 = vlaneseq
        %v1697 = vshrl.u32 %v1696, 7
        %v1698 = vsub.s32 %v1314, %v1697
        %v1699 = vrot.slane %v1662, %v1698
        %v1700 = vlaneseq
        %v1701 = vshrl.u32 %v1700, 7
        %v1702 = vsub.s32 %v1314, %v1701
        %v1703 = vrot.slane %v1665, %v1702
        %v1704 = vlaneseq
        %v1705 = vshrl.u32 %v1704, 7
        %v1706 = vsub.s32 %v1314, %v1705
        %v1707 = vrot.slane %v1668, %v1706
        %v1708 = vlaneseq
        %v1709 = vshrl.u32 %v1708, 7
        %v1710 = vsub.s32 %v1314, %v1709
        %v1711 = vrot.slane %v1671, %v1710
        %v1712 = vsel %vm1521, %v1687, %v1683
        %v1713 = vsel %vm1523, %v1691, %v1712
        %v1714 = vsel %vm1525, %v1695, %v1713
        %v1715 = vsel %vm1527, %v1699, %v1714
        %v1716 = vsel %vm1529, %v1703, %v1715
        %v1717 = vsel %vm1531, %v1707, %v1716
        %v1718 = vsel %vm1533, %v1711, %v1717
        %v1720 = vsel %vm1318, %v1718, -1e+30
        %v1721 = vsel %vm833, %v1720, -inf
        %1722 = vmax.xlane.f32.xlu0 %v1721
        %v1723 = vpop.xlane.xlu0 %1722
        %v1724 = vsub.f32 %v1720, %v1723
        %v1725 = vmul.f32 %v1724, 1.442695
        %v1726 = vpow.pop %v1725
        %v1727 = vmul.f32 %v1317, %v1726
        %v1728 = vsel %vm833, %v1727, 0.0
        %1729 = vadd.xlane.f32.xlu0 %v1728
        %v1730 = vpop.xlane.xlu0 %1729
        %v1731 = vmax.f32 %v1730, 1e-20
        %v1732 = vrcp.pop %v1731
        %v1733 = vmul.f32 %v1727, %v1732
        %v1734 = vpack.c.bf16 %v1733, %v1733
        %1736 = vrot.lane.b32.xlu0 %v1551, 96
        %v1737 = vpop.permute.xlu0 %1736
        %v1739 = vsel %vm833, %v1734, 0
        %v1742 = vsel %vm837, %v1737, 0
        %1744 = vmatprep.subr.bf16.mxu0 0
        %1745 = vmatpush1.bf16.msra.mxu0 0
        %1746 = vmatprep.subr.bf16.mxu0 0
        %1747 = vmatpush1.bf16.msra.mxu0 0
        %1748 = vmatprep.subr.bf16.mxu0 0
        %1749 = vmatpush1.bf16.msra.mxu0 0
        %1750 = vmatprep.subr.bf16.mxu0 0
        %1751 = vmatpush1.bf16.msra.mxu0 0
        %1752 = vmatprep.subr.bf16.mxu0 0
        %1753 = vmatpush1.bf16.msra.mxu0 0
        %1754 = vmatprep.subr.bf16.mxu0 0
        %1755 = vmatpush1.bf16.msra.mxu0 0
        %1756 = vmatprep.subr.bf16.mxu0 0
        %1757 = vmatpush1.bf16.msra.mxu0 0
        %1758 = vmatprep.subr.bf16.mxu0 0
        %1759 = vmatpush1.bf16.msra.mxu0 %v1742
        %1760 = vmatprep.subr.bf16.mxu0 0
        %1761 = vmatpush2.bf16.msra.mxu0 0
        %1762 = vmatprep.subr.bf16.mxu0 0
        %1763 = vmatpush2.bf16.msra.mxu0 0
        %1764 = vmatprep.subr.bf16.mxu0 0
        %1765 = vmatpush2.bf16.msra.mxu0 0
        %1766 = vmatprep.subr.bf16.mxu0 0
        %1767 = vmatpush2.bf16.msra.mxu0 0
        %1768 = vmatprep.subr.bf16.mxu0 0
        %1769 = vmatpush2.bf16.msra.mxu0 0
        %1770 = vmatprep.subr.bf16.mxu0 0
        %1771 = vmatpush2.bf16.msra.mxu0 0
        %1772 = vmatprep.subr.bf16.mxu0 0
        %1773 = vmatpush2.bf16.msra.mxu0 0
        %1774 = vmatprep.subr.bf16.mxu0 0
        %1775 = vmatpush2.bf16.msra.mxu0 0
        %1776 = vmatprep.mubr.bf16.mxu0 0
        %1777 = vmatmul.mubr.bf16.gmra.mxu0 %v1739
        %v1778 = vpop.f32.mrf.mxu0
        %v1779 = vadd.f32 0.0, %v1778
        %v1780 = vpop.f32.mrf.mxu0
        %v1781 = vpop.f32.mrf.mxu0
        %v1782 = vpop.f32.mrf.mxu0
        %1783 = vdwg.mxu0
        %s1784 = scalar_lea.vmem %s10, 2
        %v1785 = vld [vmem:[%s1784] sm:$0x1]
        %v1787 = vlaneseq
        %v1788 = vshrl.u32 %v1787, 7
        %v1789 = vsub.s32 0, %v1788
        %v1790 = vrot.slane %v1785, %v1789
        %1791 = vrot.lane.b32.xlu0 %v1790, 64
        %v1792 = vpop.permute.xlu0 %1791
        %v1794 = vmul.f32 %v1434, %v1792
        %v1795 = vmul.f32 %v1435, %v1792
        %v1796 = vmul.f32 %v1436, %v1792
        %v1797 = vmul.f32 %v1437, %v1792
        %v1798 = vmul.f32 %v1438, %v1792
        %v1799 = vmul.f32 %v1439, %v1792
        %v1800 = vmul.f32 %v1440, %v1792
        %v1801 = vmul.f32 %v1441, %v1792
        %1810 = vrot.lane.b32.xlu0 %v1794, 64
        %v1811 = vpop.permute.xlu0 %1810
        %1812 = vrot.lane.b32.xlu0 %v1795, 64
        %v1813 = vpop.permute.xlu0 %1812
        %1814 = vrot.lane.b32.xlu0 %v1796, 64
        %v1815 = vpop.permute.xlu0 %1814
        %1816 = vrot.lane.b32.xlu0 %v1797, 64
        %v1817 = vpop.permute.xlu0 %1816
        %1818 = vrot.lane.b32.xlu0 %v1798, 64
        %v1819 = vpop.permute.xlu0 %1818
        %1820 = vrot.lane.b32.xlu0 %v1799, 64
        %v1821 = vpop.permute.xlu0 %1820
        %1822 = vrot.lane.b32.xlu0 %v1800, 64
        %v1823 = vpop.permute.xlu0 %1822
        %1824 = vrot.lane.b32.xlu0 %v1801, 64
        %v1825 = vpop.permute.xlu0 %1824
        %v1834 = vsel %vm1456, %v1811, 0.0
        %1835 = vadd.xlane.f32.xlu0 %v1834
        %v1836 = vpop.xlane.xlu0 %1835
        %v1837 = vsel %vm1456, %v1813, 0.0
        %1838 = vadd.xlane.f32.xlu0 %v1837
        %v1839 = vpop.xlane.xlu0 %1838
        %v1840 = vsel %vm1456, %v1815, 0.0
        %1841 = vadd.xlane.f32.xlu0 %v1840
        %v1842 = vpop.xlane.xlu0 %1841
        %v1843 = vsel %vm1456, %v1817, 0.0
        %1844 = vadd.xlane.f32.xlu0 %v1843
        %v1845 = vpop.xlane.xlu0 %1844
        %v1846 = vsel %vm1456, %v1819, 0.0
        %1847 = vadd.xlane.f32.xlu0 %v1846
        %v1848 = vpop.xlane.xlu0 %1847
        %v1849 = vsel %vm1456, %v1821, 0.0
        %1850 = vadd.xlane.f32.xlu0 %v1849
        %v1851 = vpop.xlane.xlu0 %1850
        %v1852 = vsel %vm1456, %v1823, 0.0
        %1853 = vadd.xlane.f32.xlu0 %v1852
        %v1854 = vpop.xlane.xlu0 %1853
        %v1855 = vsel %vm1456, %v1825, 0.0
        %1856 = vadd.xlane.f32.xlu0 %v1855
        %v1857 = vpop.xlane.xlu0 %1856
        %v1866 = vlaneseq
        %v1867 = vshrl.u32 %v1866, 7
        %v1868 = vsub.s32 %v1314, %v1867
        %v1869 = vrot.slane %v1836, %v1868
        %v1870 = vlaneseq
        %v1871 = vshrl.u32 %v1870, 7
        %v1872 = vsub.s32 %v1314, %v1871
        %v1873 = vrot.slane %v1839, %v1872
        %v1874 = vlaneseq
        %v1875 = vshrl.u32 %v1874, 7
        %v1876 = vsub.s32 %v1314, %v1875
        %v1877 = vrot.slane %v1842, %v1876
        %v1878 = vlaneseq
        %v1879 = vshrl.u32 %v1878, 7
        %v1880 = vsub.s32 %v1314, %v1879
        %v1881 = vrot.slane %v1845, %v1880
        %v1882 = vlaneseq
        %v1883 = vshrl.u32 %v1882, 7
        %v1884 = vsub.s32 %v1314, %v1883
        %v1885 = vrot.slane %v1848, %v1884
        %v1886 = vlaneseq
        %v1887 = vshrl.u32 %v1886, 7
        %v1888 = vsub.s32 %v1314, %v1887
        %v1889 = vrot.slane %v1851, %v1888
        %v1890 = vlaneseq
        %v1891 = vshrl.u32 %v1890, 7
        %v1892 = vsub.s32 %v1314, %v1891
        %v1893 = vrot.slane %v1854, %v1892
        %v1894 = vlaneseq
        %v1895 = vshrl.u32 %v1894, 7
        %v1896 = vsub.s32 %v1314, %v1895
        %v1897 = vrot.slane %v1857, %v1896
        %v1898 = vsel %vm1521, %v1873, %v1869
        %v1899 = vsel %vm1523, %v1877, %v1898
        %v1900 = vsel %vm1525, %v1881, %v1899
        %v1901 = vsel %vm1527, %v1885, %v1900
        %v1902 = vsel %vm1529, %v1889, %v1901
        %v1903 = vsel %vm1531, %v1893, %v1902
        %v1904 = vsel %vm1533, %v1897, %v1903
        %v1906 = vsel %vm1318, %v1904, -1e+30
        %v1907 = vsel %vm833, %v1906, -inf
        %1908 = vmax.xlane.f32.xlu0 %v1907
        %v1909 = vpop.xlane.xlu0 %1908
        %v1910 = vsub.f32 %v1906, %v1909
        %v1911 = vmul.f32 %v1910, 1.442695
        %v1912 = vpow.pop %v1911
        %v1913 = vmul.f32 %v1317, %v1912
        %v1914 = vsel %vm833, %v1913, 0.0
        %1915 = vadd.xlane.f32.xlu0 %v1914
        %v1916 = vpop.xlane.xlu0 %1915
        %v1917 = vmax.f32 %v1916, 1e-20
        %v1918 = vrcp.pop %v1917
        %v1919 = vmul.f32 %v1913, %v1918
        %v1920 = vpack.c.bf16 %v1919, %v1919
        %1921 = vrot.lane.b32.xlu0 %v1551, 64
        %v1922 = vpop.permute.xlu0 %1921
        %v1924 = vsel %vm833, %v1920, 0
        %v1927 = vsel %vm837, %v1922, 0
        %1929 = vmatprep.subr.bf16.mxu0 0
        %1930 = vmatpush1.bf16.msra.mxu0 0
        %1931 = vmatprep.subr.bf16.mxu0 0
        %1932 = vmatpush1.bf16.msra.mxu0 0
        %1933 = vmatprep.subr.bf16.mxu0 0
        %1934 = vmatpush1.bf16.msra.mxu0 0
        %1935 = vmatprep.subr.bf16.mxu0 0
        %1936 = vmatpush1.bf16.msra.mxu0 0
        %1937 = vmatprep.subr.bf16.mxu0 0
        %1938 = vmatpush1.bf16.msra.mxu0 0
        %1939 = vmatprep.subr.bf16.mxu0 0
        %1940 = vmatpush1.bf16.msra.mxu0 0
        %1941 = vmatprep.subr.bf16.mxu0 0
        %1942 = vmatpush1.bf16.msra.mxu0 0
        %1943 = vmatprep.subr.bf16.mxu0 0
        %1944 = vmatpush1.bf16.msra.mxu0 %v1927
        %1945 = vmatprep.subr.bf16.mxu0 0
        %1946 = vmatpush2.bf16.msra.mxu0 0
        %1947 = vmatprep.subr.bf16.mxu0 0
        %1948 = vmatpush2.bf16.msra.mxu0 0
        %1949 = vmatprep.subr.bf16.mxu0 0
        %1950 = vmatpush2.bf16.msra.mxu0 0
        %1951 = vmatprep.subr.bf16.mxu0 0
        %1952 = vmatpush2.bf16.msra.mxu0 0
        %1953 = vmatprep.subr.bf16.mxu0 0
        %1954 = vmatpush2.bf16.msra.mxu0 0
        %1955 = vmatprep.subr.bf16.mxu0 0
        %1956 = vmatpush2.bf16.msra.mxu0 0
        %1957 = vmatprep.subr.bf16.mxu0 0
        %1958 = vmatpush2.bf16.msra.mxu0 0
        %1959 = vmatprep.subr.bf16.mxu0 0
        %1960 = vmatpush2.bf16.msra.mxu0 0
        %1961 = vmatprep.mubr.bf16.mxu0 0
        %1962 = vmatmul.mubr.bf16.gmra.mxu0 %v1924
        %v1963 = vpop.f32.mrf.mxu0
        %v1964 = vadd.f32 0.0, %v1963
        %v1965 = vpop.f32.mrf.mxu0
        %v1966 = vpop.f32.mrf.mxu0
        %v1967 = vpop.f32.mrf.mxu0
        %1968 = vdwg.mxu0
        %1970 = vrot.lane.b32.xlu0 %v1779, 32
        %v1971 = vpop.permute.xlu0 %1970
        %1974 = vrot.lane.b32.xlu0 %v1964, 64
        %v1975 = vpop.permute.xlu0 %1974
        %v1977 = vsel %vm1456, %v1593, %v1971
        %vm1978 = vcmask 523264
        %v1979 = vsel %vm1978, %v1977, %v1975
        %vm1980 = vcmask 785408
        %v1981 = vsel %vm1980, %v1979, 0.0
        %v1982 = vadd.f32 %v1981, %v1306
        %v1983 = vld [vmem:[%s12] sm:$0x1]
        %v1985 = vlaneseq
        %v1986 = vshrl.u32 %v1985, 7
        %v1987 = vsub.s32 0, %v1986
        %v1988 = vrot.slane %v1983, %v1987
        %v1990 = vadd.f32 %v1982, %v1988
        %v1991 = vmax.f32 %v1990, 0.0
        %v1992 = vpack.c.bf16 %v1991, %v1991
        %v1993 = vld [vmem:[#allocation14] sm:$0xf]
        %v1994 = vld [vmem:[#allocation14 + $0x4] sm:$0xf]
        %v1995 = vld [vmem:[#allocation14 + $0x8] sm:$0xf]
        %v1996 = vld [vmem:[#allocation14 + $0xc] sm:$0xf]
        %v1997 = vld [vmem:[#allocation14 + $0x10] sm:$0xf]
        %v1998 = vld [vmem:[#allocation14 + $0x14] sm:$0xf]
        %v1999 = vld [vmem:[#allocation14 + $0x18] sm:$0xf]
        %v2000 = vld [vmem:[#allocation14 + $0x1c] sm:$0xf]
        %v2001 = vld [vmem:[#allocation14 + $0x20] sm:$0xf]
        %v2002 = vld [vmem:[#allocation14 + $0x24] sm:$0xf]
        %v2003 = vld [vmem:[#allocation14 + $0x28] sm:$0xf]
        %v2004 = vld [vmem:[#allocation14 + $0x2c] sm:$0xf]
        %v2005 = vld [vmem:[#allocation14 + $0x30] sm:$0xf]
        %v2006 = vld [vmem:[#allocation14 + $0x34] sm:$0xf]
        %v2007 = vld [vmem:[#allocation14 + $0x38] sm:$0xf]
        %v2008 = vld [vmem:[#allocation14 + $0x3c] sm:$0xf]
        %v2025 = vunpack.c.l.b16 %v1993
        %v2026 = vunpack.c.l.b16 %v1994
        %v2027 = vunpack.c.l.b16 %v1995
        %v2028 = vunpack.c.l.b16 %v1996
        %v2029 = vunpack.c.l.b16 %v1997
        %v2030 = vunpack.c.l.b16 %v1998
        %v2031 = vunpack.c.l.b16 %v1999
        %v2032 = vunpack.c.l.b16 %v2000
        %v2033 = vunpack.c.l.b16 %v2001
        %v2034 = vunpack.c.l.b16 %v2002
        %v2035 = vunpack.c.l.b16 %v2003
        %v2036 = vunpack.c.l.b16 %v2004
        %v2037 = vunpack.c.l.b16 %v2005
        %v2038 = vunpack.c.l.b16 %v2006
        %v2039 = vunpack.c.l.b16 %v2007
        %v2040 = vunpack.c.l.b16 %v2008
        %v2041 = vpack.c.b16 %v2026, %v2025
        %v2042 = vpack.c.b16 %v2028, %v2027
        %v2043 = vpack.c.b16 %v2030, %v2029
        %v2044 = vpack.c.b16 %v2032, %v2031
        %v2045 = vpack.c.b16 %v2034, %v2033
        %v2046 = vpack.c.b16 %v2036, %v2035
        %v2047 = vpack.c.b16 %v2038, %v2037
        %v2048 = vpack.c.b16 %v2040, %v2039
        %2057 = vmatprep.subr.bf16.mxu0 0
        %2058 = vmatpush1.bf16.msra.mxu0 %v2048
        %2059 = vmatprep.subr.bf16.mxu0 0
        %2060 = vmatpush1.bf16.msra.mxu0 %v2047
        %2061 = vmatprep.subr.bf16.mxu0 0
        %2062 = vmatpush1.bf16.msra.mxu0 %v2046
        %2063 = vmatprep.subr.bf16.mxu0 0
        %2064 = vmatpush1.bf16.msra.mxu0 %v2045
        %2065 = vmatprep.subr.bf16.mxu0 0
        %2066 = vmatpush1.bf16.msra.mxu0 %v2044
        %2067 = vmatprep.subr.bf16.mxu0 0
        %2068 = vmatpush1.bf16.msra.mxu0 %v2043
        %2069 = vmatprep.subr.bf16.mxu0 0
        %2070 = vmatpush1.bf16.msra.mxu0 %v2042
        %2071 = vmatprep.subr.bf16.mxu0 0
        %2072 = vmatpush1.bf16.msra.mxu0 %v2041
        %2073 = vmatprep.subr.bf16.mxu0 0
        %2074 = vmatpush2.bf16.msra.mxu0 0
        %2075 = vmatprep.subr.bf16.mxu0 0
        %2076 = vmatpush2.bf16.msra.mxu0 0
        %2077 = vmatprep.subr.bf16.mxu0 0
        %2078 = vmatpush2.bf16.msra.mxu0 0
        %2079 = vmatprep.subr.bf16.mxu0 0
        %2080 = vmatpush2.bf16.msra.mxu0 0
        %2081 = vmatprep.subr.bf16.mxu0 0
        %2082 = vmatpush2.bf16.msra.mxu0 0
        %2083 = vmatprep.subr.bf16.mxu0 0
        %2084 = vmatpush2.bf16.msra.mxu0 0
        %2085 = vmatprep.subr.bf16.mxu0 0
        %2086 = vmatpush2.bf16.msra.mxu0 0
        %2087 = vmatprep.subr.bf16.mxu0 0
        %2088 = vmatpush2.bf16.msra.mxu0 0
        %2089 = vmatprep.mubr.bf16.mxu0 0
        %2090 = vmatmul.mubr.bf16.gmra.mxu0 %v1992
        %v2091 = vpop.f32.mrf.mxu0
        %v2092 = vadd.f32 0.0, %v2091
        %v2093 = vpop.f32.mrf.mxu0
        %v2094 = vpop.f32.mrf.mxu0
        %v2095 = vpop.f32.mrf.mxu0
        %2096 = vdwg.mxu0
        %v2097 = vld [vmem:[#allocation16] sm:$0xf]
        %v2098 = vld [vmem:[#allocation16 + $0x4] sm:$0xf]
        %v2099 = vld [vmem:[#allocation16 + $0x8] sm:$0xf]
        %v2100 = vld [vmem:[#allocation16 + $0xc] sm:$0xf]
        %v2101 = vld [vmem:[#allocation16 + $0x10] sm:$0xf]
        %v2102 = vld [vmem:[#allocation16 + $0x14] sm:$0xf]
        %v2103 = vld [vmem:[#allocation16 + $0x18] sm:$0xf]
        %v2104 = vld [vmem:[#allocation16 + $0x1c] sm:$0xf]
        %v2105 = vld [vmem:[#allocation16 + $0x20] sm:$0xf]
        %v2106 = vld [vmem:[#allocation16 + $0x24] sm:$0xf]
        %v2107 = vld [vmem:[#allocation16 + $0x28] sm:$0xf]
        %v2108 = vld [vmem:[#allocation16 + $0x2c] sm:$0xf]
        %v2109 = vld [vmem:[#allocation16 + $0x30] sm:$0xf]
        %v2110 = vld [vmem:[#allocation16 + $0x34] sm:$0xf]
        %v2111 = vld [vmem:[#allocation16 + $0x38] sm:$0xf]
        %v2112 = vld [vmem:[#allocation16 + $0x3c] sm:$0xf]
        %v2129 = vunpack.c.l.b16 %v2097
        %v2130 = vunpack.c.l.b16 %v2098
        %v2131 = vunpack.c.l.b16 %v2099
        %v2132 = vunpack.c.l.b16 %v2100
        %v2133 = vunpack.c.l.b16 %v2101
        %v2134 = vunpack.c.l.b16 %v2102
        %v2135 = vunpack.c.l.b16 %v2103
        %v2136 = vunpack.c.l.b16 %v2104
        %v2137 = vunpack.c.l.b16 %v2105
        %v2138 = vunpack.c.l.b16 %v2106
        %v2139 = vunpack.c.l.b16 %v2107
        %v2140 = vunpack.c.l.b16 %v2108
        %v2141 = vunpack.c.l.b16 %v2109
        %v2142 = vunpack.c.l.b16 %v2110
        %v2143 = vunpack.c.l.b16 %v2111
        %v2144 = vunpack.c.l.b16 %v2112
        %v2145 = vpack.c.b16 %v2130, %v2129
        %v2146 = vpack.c.b16 %v2132, %v2131
        %v2147 = vpack.c.b16 %v2134, %v2133
        %v2148 = vpack.c.b16 %v2136, %v2135
        %v2149 = vpack.c.b16 %v2138, %v2137
        %v2150 = vpack.c.b16 %v2140, %v2139
        %v2151 = vpack.c.b16 %v2142, %v2141
        %v2152 = vpack.c.b16 %v2144, %v2143
        %2161 = vmatprep.subr.bf16.mxu0 0
        %2162 = vmatpush1.bf16.msra.mxu0 %v2152
        %2163 = vmatprep.subr.bf16.mxu0 0
        %2164 = vmatpush1.bf16.msra.mxu0 %v2151
        %2165 = vmatprep.subr.bf16.mxu0 0
        %2166 = vmatpush1.bf16.msra.mxu0 %v2150
        %2167 = vmatprep.subr.bf16.mxu0 0
        %2168 = vmatpush1.bf16.msra.mxu0 %v2149
        %2169 = vmatprep.subr.bf16.mxu0 0
        %2170 = vmatpush1.bf16.msra.mxu0 %v2148
        %2171 = vmatprep.subr.bf16.mxu0 0
        %2172 = vmatpush1.bf16.msra.mxu0 %v2147
        %2173 = vmatprep.subr.bf16.mxu0 0
        %2174 = vmatpush1.bf16.msra.mxu0 %v2146
        %2175 = vmatprep.subr.bf16.mxu0 0
        %2176 = vmatpush1.bf16.msra.mxu0 %v2145
        %2177 = vmatprep.subr.bf16.mxu0 0
        %2178 = vmatpush2.bf16.msra.mxu0 0
        %2179 = vmatprep.subr.bf16.mxu0 0
        %2180 = vmatpush2.bf16.msra.mxu0 0
        %2181 = vmatprep.subr.bf16.mxu0 0
        %2182 = vmatpush2.bf16.msra.mxu0 0
        %2183 = vmatprep.subr.bf16.mxu0 0
        %2184 = vmatpush2.bf16.msra.mxu0 0
        %2185 = vmatprep.subr.bf16.mxu0 0
        %2186 = vmatpush2.bf16.msra.mxu0 0
        %2187 = vmatprep.subr.bf16.mxu0 0
        %2188 = vmatpush2.bf16.msra.mxu0 0
        %2189 = vmatprep.subr.bf16.mxu0 0
        %2190 = vmatpush2.bf16.msra.mxu0 0
        %2191 = vmatprep.subr.bf16.mxu0 0
        %2192 = vmatpush2.bf16.msra.mxu0 0
        %2193 = vmatprep.mubr.bf16.mxu0 0
        %2194 = vmatmul.mubr.bf16.gmra.mxu0 %v1992
        %v2195 = vpop.f32.mrf.mxu0
        %v2196 = vadd.f32 0.0, %v2195
        %v2197 = vpop.f32.mrf.mxu0
        %v2198 = vpop.f32.mrf.mxu0
        %v2199 = vpop.f32.mrf.mxu0
        %2200 = vdwg.mxu0
        %v2201 = vpack.c.bf16 %v2092, %v2092
        %v2202 = vld [vmem:[%s14] sm:$0x1]
        %v2204 = vlaneseq
        %v2205 = vshrl.u32 %v2204, 7
        %v2206 = vsub.s32 0, %v2205
        %v2207 = vrot.slane %v2202, %v2206
        %v2210 = vsel %vm837, %v2201, 0
        %2212 = vmatprep.subr.bf16.mxu0 0
        %2213 = vmatpush1.bf16.msra.mxu0 0
        %2214 = vmatprep.subr.bf16.mxu0 0
        %2215 = vmatpush1.bf16.msra.mxu0 0
        %2216 = vmatprep.subr.bf16.mxu0 0
        %2217 = vmatpush1.bf16.msra.mxu0 0
        %2218 = vmatprep.subr.bf16.mxu0 0
        %2219 = vmatpush1.bf16.msra.mxu0 0
        %2220 = vmatprep.subr.bf16.mxu0 0
        %2221 = vmatpush1.bf16.msra.mxu0 0
        %2222 = vmatprep.subr.bf16.mxu0 0
        %2223 = vmatpush1.bf16.msra.mxu0 0
        %2224 = vmatprep.subr.bf16.mxu0 0
        %2225 = vmatpush1.bf16.msra.mxu0 0
        %2226 = vmatprep.subr.bf16.mxu0 0
        %2227 = vmatpush1.bf16.msra.mxu0 %v2210
        %2228 = vmatprep.subr.bf16.mxu0 0
        %2229 = vmatpush2.bf16.msra.mxu0 0
        %2230 = vmatprep.subr.bf16.mxu0 0
        %2231 = vmatpush2.bf16.msra.mxu0 0
        %2232 = vmatprep.subr.bf16.mxu0 0
        %2233 = vmatpush2.bf16.msra.mxu0 0
        %2234 = vmatprep.subr.bf16.mxu0 0
        %2235 = vmatpush2.bf16.msra.mxu0 0
        %2236 = vmatprep.subr.bf16.mxu0 0
        %2237 = vmatpush2.bf16.msra.mxu0 0
        %2238 = vmatprep.subr.bf16.mxu0 0
        %2239 = vmatpush2.bf16.msra.mxu0 0
        %2240 = vmatprep.subr.bf16.mxu0 0
        %2241 = vmatpush2.bf16.msra.mxu0 0
        %2242 = vmatprep.subr.bf16.mxu0 0
        %2243 = vmatpush2.bf16.msra.mxu0 0
        %2244 = vmatprep.mubr.bf16.mxu0 0
        %2245 = vmatmul.mubr.bf16.gmra.mxu0 %v835
        %v2246 = vpop.f32.mrf.mxu0
        %v2247 = vadd.f32 %v2207, %v2246
        %v2248 = vpop.f32.mrf.mxu0
        %v2249 = vpop.f32.mrf.mxu0
        %v2250 = vpop.f32.mrf.mxu0
        %2251 = vdwg.mxu0
        %v2252 = vadd.f32 %v2247, %v2196
        %v2253 = vmax.f32 %v2252, 0.0
        %v2254 = vld [vmem:[%s731] sm:$0xf]
        %v2255 = vpack.c.bf16 %v2253, %v2253
        %v2257 = vsel %vm833, %v2254, 0
        %v2260 = vsel %vm837, %v2255, 0
        %2262 = vmatprep.subr.bf16.mxu0 0
        %2263 = vmatpush1.bf16.msra.mxu0 0
        %2264 = vmatprep.subr.bf16.mxu0 0
        %2265 = vmatpush1.bf16.msra.mxu0 0
        %2266 = vmatprep.subr.bf16.mxu0 0
        %2267 = vmatpush1.bf16.msra.mxu0 0
        %2268 = vmatprep.subr.bf16.mxu0 0
        %2269 = vmatpush1.bf16.msra.mxu0 0
        %2270 = vmatprep.subr.bf16.mxu0 0
        %2271 = vmatpush1.bf16.msra.mxu0 0
        %2272 = vmatprep.subr.bf16.mxu0 0
        %2273 = vmatpush1.bf16.msra.mxu0 0
        %2274 = vmatprep.subr.bf16.mxu0 0
        %2275 = vmatpush1.bf16.msra.mxu0 0
        %2276 = vmatprep.subr.bf16.mxu0 0
        %2277 = vmatpush1.bf16.msra.mxu0 %v2260
        %2278 = vmatprep.subr.bf16.mxu0 0
        %2279 = vmatpush2.bf16.msra.mxu0 0
        %2280 = vmatprep.subr.bf16.mxu0 0
        %2281 = vmatpush2.bf16.msra.mxu0 0
        %2282 = vmatprep.subr.bf16.mxu0 0
        %2283 = vmatpush2.bf16.msra.mxu0 0
        %2284 = vmatprep.subr.bf16.mxu0 0
        %2285 = vmatpush2.bf16.msra.mxu0 0
        %2286 = vmatprep.subr.bf16.mxu0 0
        %2287 = vmatpush2.bf16.msra.mxu0 0
        %2288 = vmatprep.subr.bf16.mxu0 0
        %2289 = vmatpush2.bf16.msra.mxu0 0
        %2290 = vmatprep.subr.bf16.mxu0 0
        %2291 = vmatpush2.bf16.msra.mxu0 0
        %2292 = vmatprep.subr.bf16.mxu0 0
        %2293 = vmatpush2.bf16.msra.mxu0 0
        %2294 = vmatprep.mubr.bf16.mxu0 0
        %2295 = vmatmul.mubr.bf16.gmra.mxu0 %v2257
        %v2296 = vpop.f32.mrf.mxu0
        %v2297 = vadd.f32 0.0, %v2296
        %v2298 = vpop.f32.mrf.mxu0
        %v2299 = vpop.f32.mrf.mxu0
        %v2300 = vpop.f32.mrf.mxu0
        %2301 = vdwg.mxu0
        %v2302 = vpack.c.bf16 %v2297, %v2297
        %v2303 = vld [vmem:[#allocation17] sm:$0xf]
        %v2304 = vld [vmem:[#allocation17 + $0x4] sm:$0xf]
        %v2305 = vld [vmem:[#allocation17 + $0x8] sm:$0xf]
        %v2306 = vld [vmem:[#allocation17 + $0xc] sm:$0xf]
        %v2307 = vld [vmem:[#allocation17 + $0x10] sm:$0xf]
        %v2308 = vld [vmem:[#allocation17 + $0x14] sm:$0xf]
        %v2309 = vld [vmem:[#allocation17 + $0x18] sm:$0xf]
        %v2310 = vld [vmem:[#allocation17 + $0x1c] sm:$0xf]
        %v2311 = vld [vmem:[#allocation17 + $0x20] sm:$0xf]
        %v2312 = vld [vmem:[#allocation17 + $0x24] sm:$0xf]
        %v2313 = vld [vmem:[#allocation17 + $0x28] sm:$0xf]
        %v2314 = vld [vmem:[#allocation17 + $0x2c] sm:$0xf]
        %v2315 = vld [vmem:[#allocation17 + $0x30] sm:$0xf]
        %v2316 = vld [vmem:[#allocation17 + $0x34] sm:$0xf]
        %v2317 = vld [vmem:[#allocation17 + $0x38] sm:$0xf]
        %v2318 = vld [vmem:[#allocation17 + $0x3c] sm:$0xf]
        %v2319 = vld [vmem:[%s17] sm:$0x1]
        %v2321 = vlaneseq
        %v2322 = vshrl.u32 %v2321, 7
        %v2323 = vsub.s32 0, %v2322
        %v2324 = vrot.slane %v2319, %v2323
        %v2342 = vunpack.c.l.b16 %v2303
        %v2343 = vunpack.c.l.b16 %v2304
        %v2344 = vunpack.c.l.b16 %v2305
        %v2345 = vunpack.c.l.b16 %v2306
        %v2346 = vunpack.c.l.b16 %v2307
        %v2347 = vunpack.c.l.b16 %v2308
        %v2348 = vunpack.c.l.b16 %v2309
        %v2349 = vunpack.c.l.b16 %v2310
        %v2350 = vunpack.c.l.b16 %v2311
        %v2351 = vunpack.c.l.b16 %v2312
        %v2352 = vunpack.c.l.b16 %v2313
        %v2353 = vunpack.c.l.b16 %v2314
        %v2354 = vunpack.c.l.b16 %v2315
        %v2355 = vunpack.c.l.b16 %v2316
        %v2356 = vunpack.c.l.b16 %v2317
        %v2357 = vunpack.c.l.b16 %v2318
        %v2358 = vpack.c.b16 %v2343, %v2342
        %v2359 = vpack.c.b16 %v2345, %v2344
        %v2360 = vpack.c.b16 %v2347, %v2346
        %v2361 = vpack.c.b16 %v2349, %v2348
        %v2362 = vpack.c.b16 %v2351, %v2350
        %v2363 = vpack.c.b16 %v2353, %v2352
        %v2364 = vpack.c.b16 %v2355, %v2354
        %v2365 = vpack.c.b16 %v2357, %v2356
        %2374 = vmatprep.subr.bf16.mxu0 0
        %2375 = vmatpush1.bf16.msra.mxu0 %v2365
        %2376 = vmatprep.subr.bf16.mxu0 0
        %2377 = vmatpush1.bf16.msra.mxu0 %v2364
        %2378 = vmatprep.subr.bf16.mxu0 0
        %2379 = vmatpush1.bf16.msra.mxu0 %v2363
        %2380 = vmatprep.subr.bf16.mxu0 0
        %2381 = vmatpush1.bf16.msra.mxu0 %v2362
        %2382 = vmatprep.subr.bf16.mxu0 0
        %2383 = vmatpush1.bf16.msra.mxu0 %v2361
        %2384 = vmatprep.subr.bf16.mxu0 0
        %2385 = vmatpush1.bf16.msra.mxu0 %v2360
        %2386 = vmatprep.subr.bf16.mxu0 0
        %2387 = vmatpush1.bf16.msra.mxu0 %v2359
        %2388 = vmatprep.subr.bf16.mxu0 0
        %2389 = vmatpush1.bf16.msra.mxu0 %v2358
        %2390 = vmatprep.subr.bf16.mxu0 0
        %2391 = vmatpush2.bf16.msra.mxu0 0
        %2392 = vmatprep.subr.bf16.mxu0 0
        %2393 = vmatpush2.bf16.msra.mxu0 0
        %2394 = vmatprep.subr.bf16.mxu0 0
        %2395 = vmatpush2.bf16.msra.mxu0 0
        %2396 = vmatprep.subr.bf16.mxu0 0
        %2397 = vmatpush2.bf16.msra.mxu0 0
        %2398 = vmatprep.subr.bf16.mxu0 0
        %2399 = vmatpush2.bf16.msra.mxu0 0
        %2400 = vmatprep.subr.bf16.mxu0 0
        %2401 = vmatpush2.bf16.msra.mxu0 0
        %2402 = vmatprep.subr.bf16.mxu0 0
        %2403 = vmatpush2.bf16.msra.mxu0 0
        %2404 = vmatprep.subr.bf16.mxu0 0
        %2405 = vmatpush2.bf16.msra.mxu0 0
        %2406 = vmatprep.mubr.bf16.mxu0 0
        %2407 = vmatmul.mubr.bf16.gmra.mxu0 %v2302
        %v2408 = vpop.f32.mrf.mxu0
        %v2409 = vadd.f32 %v2324, %v2408
        %v2410 = vpop.f32.mrf.mxu0
        %v2411 = vpop.f32.mrf.mxu0
        %v2412 = vpop.f32.mrf.mxu0
        %2413 = vdwg.mxu0
        %v2414 = vmax.f32 %v2409, 0.0
        %v2415 = vpack.c.bf16 %v2414, %v2414
        %v2416 = vld [vmem:[#allocation19] sm:$0xf]
        %v2417 = vld [vmem:[#allocation19 + $0x4] sm:$0xf]
        %v2418 = vld [vmem:[#allocation19 + $0x8] sm:$0xf]
        %v2419 = vld [vmem:[#allocation19 + $0xc] sm:$0xf]
        %v2420 = vld [vmem:[#allocation19 + $0x10] sm:$0xf]
        %v2421 = vld [vmem:[#allocation19 + $0x14] sm:$0xf]
        %v2422 = vld [vmem:[#allocation19 + $0x18] sm:$0xf]
        %v2423 = vld [vmem:[#allocation19 + $0x1c] sm:$0xf]
        %v2424 = vld [vmem:[#allocation19 + $0x20] sm:$0xf]
        %v2425 = vld [vmem:[#allocation19 + $0x24] sm:$0xf]
        %v2426 = vld [vmem:[#allocation19 + $0x28] sm:$0xf]
        %v2427 = vld [vmem:[#allocation19 + $0x2c] sm:$0xf]
        %v2428 = vld [vmem:[#allocation19 + $0x30] sm:$0xf]
        %v2429 = vld [vmem:[#allocation19 + $0x34] sm:$0xf]
        %v2430 = vld [vmem:[#allocation19 + $0x38] sm:$0xf]
        %v2431 = vld [vmem:[#allocation19 + $0x3c] sm:$0xf]
        %v2432 = vld [vmem:[%s19] sm:$0x1]
        %v2434 = vlaneseq
        %v2435 = vshrl.u32 %v2434, 7
        %v2436 = vsub.s32 0, %v2435
        %v2437 = vrot.slane %v2432, %v2436
        %v2455 = vunpack.c.l.b16 %v2416
        %v2456 = vunpack.c.l.b16 %v2417
        %v2457 = vunpack.c.l.b16 %v2418
        %v2458 = vunpack.c.l.b16 %v2419
        %v2459 = vunpack.c.l.b16 %v2420
        %v2460 = vunpack.c.l.b16 %v2421
        %v2461 = vunpack.c.l.b16 %v2422
        %v2462 = vunpack.c.l.b16 %v2423
        %v2463 = vunpack.c.l.b16 %v2424
        %v2464 = vunpack.c.l.b16 %v2425
        %v2465 = vunpack.c.l.b16 %v2426
        %v2466 = vunpack.c.l.b16 %v2427
        %v2467 = vunpack.c.l.b16 %v2428
        %v2468 = vunpack.c.l.b16 %v2429
        %v2469 = vunpack.c.l.b16 %v2430
        %v2470 = vunpack.c.l.b16 %v2431
        %v2471 = vpack.c.b16 %v2456, %v2455
        %v2472 = vpack.c.b16 %v2458, %v2457
        %v2473 = vpack.c.b16 %v2460, %v2459
        %v2474 = vpack.c.b16 %v2462, %v2461
        %v2475 = vpack.c.b16 %v2464, %v2463
        %v2476 = vpack.c.b16 %v2466, %v2465
        %v2477 = vpack.c.b16 %v2468, %v2467
        %v2478 = vpack.c.b16 %v2470, %v2469
        %2487 = vmatprep.subr.bf16.mxu0 0
        %2488 = vmatpush1.bf16.msra.mxu0 %v2478
        %2489 = vmatprep.subr.bf16.mxu0 0
        %2490 = vmatpush1.bf16.msra.mxu0 %v2477
        %2491 = vmatprep.subr.bf16.mxu0 0
        %2492 = vmatpush1.bf16.msra.mxu0 %v2476
        %2493 = vmatprep.subr.bf16.mxu0 0
        %2494 = vmatpush1.bf16.msra.mxu0 %v2475
        %2495 = vmatprep.subr.bf16.mxu0 0
        %2496 = vmatpush1.bf16.msra.mxu0 %v2474
        %2497 = vmatprep.subr.bf16.mxu0 0
        %2498 = vmatpush1.bf16.msra.mxu0 %v2473
        %2499 = vmatprep.subr.bf16.mxu0 0
        %2500 = vmatpush1.bf16.msra.mxu0 %v2472
        %2501 = vmatprep.subr.bf16.mxu0 0
        %2502 = vmatpush1.bf16.msra.mxu0 %v2471
        %2503 = vmatprep.subr.bf16.mxu0 0
        %2504 = vmatpush2.bf16.msra.mxu0 0
        %2505 = vmatprep.subr.bf16.mxu0 0
        %2506 = vmatpush2.bf16.msra.mxu0 0
        %2507 = vmatprep.subr.bf16.mxu0 0
        %2508 = vmatpush2.bf16.msra.mxu0 0
        %2509 = vmatprep.subr.bf16.mxu0 0
        %2510 = vmatpush2.bf16.msra.mxu0 0
        %2511 = vmatprep.subr.bf16.mxu0 0
        %2512 = vmatpush2.bf16.msra.mxu0 0
        %2513 = vmatprep.subr.bf16.mxu0 0
        %2514 = vmatpush2.bf16.msra.mxu0 0
        %2515 = vmatprep.subr.bf16.mxu0 0
        %2516 = vmatpush2.bf16.msra.mxu0 0
        %2517 = vmatprep.subr.bf16.mxu0 0
        %2518 = vmatpush2.bf16.msra.mxu0 0
        %2519 = vmatprep.mubr.bf16.mxu0 0
        %2520 = vmatmul.mubr.bf16.gmra.mxu0 %v2415
        %v2521 = vpop.f32.mrf.mxu0
        %v2522 = vadd.f32 %v2437, %v2521
        %v2523 = vpop.f32.mrf.mxu0
        %v2524 = vpop.f32.mrf.mxu0
        %v2525 = vpop.f32.mrf.mxu0
        %2526 = vdwg.mxu0
        %2527 = vst [vmem:[%s829] sm:$0xff] %v2522
        %s2528 = sand.u32 %s487, 1
        %s2529 = scalar_lea.sflag [#allocation4], %s2528
        %s2530 = sand.u32 %s487, 1
        %s2531 = smul.addr %s2530, 8
        %s2532 = scalar_lea.vmem [#allocation20], %s2531
        // Predicated region
        $region145: #{tpu_custom_call.1} parent=99 // pred_check
          %p2533 = pneg %p497
        $region146: #{tpu_custom_call.1} parent=99 // pred_check_branch
          %2535 = sbr.rel (%p2533) target = $region148
        $region147: #{tpu_custom_call.1} parent=99 // pred_region
          %s2537 = ssub.s32 128, 128
          %2538 = vsyncadd %s2529, %s2537
          %s2539 = smul.addr %s44, 128
          %s2540 = scalar_lea.hbm %s20, %s2539
          %s2542 = sshll.u32 %s2532, 4
          %s2543 = int_to_ptr.vmem [resolvable:$true] %s2542
          %2545 = dma.vmem_to_hbm [thread:$0]  %s2543, 128, %s2540, %s2529
        $region148: #{tpu_custom_call.1} parent=99 // pred_fallthru
          _
      $region100: #{tpu_custom_call.1} parent=5 // pred_fallthru
        _
      %p2546 = scmp.le.s32.totalorder 2, %s39
      // Predicated region
      $region149: #{tpu_custom_call.1} parent=5 // pred_check
        %p2547 = pneg %p2546
      $region150: #{tpu_custom_call.1} parent=5 // pred_check_branch
        %2549 = sbr.rel (%p2547) target = $region152
      $region151: #{tpu_custom_call.1} parent=5 // pred_region
        %s2550 = ssub.s32 %s39, 2
        // Predicated region
        $region153: #{tpu_custom_call.1} parent=151 // pred_check
          %p2551 = pneg %p503
        $region154: #{tpu_custom_call.1} parent=151 // pred_check_branch
          %2553 = sbr.rel (%p2551) target = $region156
        $region155: #{tpu_custom_call.1} parent=151 // pred_region
          %s2554 = sand.u32 %s488, 1
          %s2555 = scalar_lea.sflag [#allocation4], %s2554
          %s2556 = sand.u32 %s488, 1
          %s2557 = smul.addr %s2556, 8
          %s2558 = scalar_lea.vmem [#allocation20], %s2557
          %2559 = dma.done %s2555, 128
        $region156: #{tpu_custom_call.1} parent=151 // pred_fallthru
          _
      $region152: #{tpu_custom_call.1} parent=5 // pred_fallthru
        _
    $region6: #{tpu_custom_call.1} parent=1 // loop_footer
      %s43 = sadd.s32 1, %s39
    $region7: #{tpu_custom_call.1} parent=1 // loop_footer_branch
      %38 = sbr.rel target = $region3
    $region8: #{tpu_custom_call.1} parent=1 // loop_exit
      _
    %2560 = vsyncpa [#allocation3], 1
    %s2561 = scalar_lea.sflag [#allocation3], 1
    %2562 = vsyncpa %s2561, 1
    %2563 = vsyncpa [#allocation6], 1
    %s2564 = scalar_lea.sflag [#allocation6], 1
    %2565 = vsyncpa %s2564, 1
    %2566 = vsyncpa [#allocation9], 1
    %2567 = vsyncpa [#allocation12], 1
    %2568 = vsyncpa [#allocation15], 1
    %2569 = vsyncpa [#allocation18], 1
    %2570 = vsyncpa [#allocation4], 1
    %s2571 = scalar_lea.sflag [#allocation4], 1
    %2572 = vsyncpa %s2571, 1

</llo_original>
